<compile_context>
chip_gen: v6e
topology: v6e:2x2x1
jax: 0.10.0
libtpu: 0.0.40
codegen_flags: <defaults>
</compile_context>

<pallas_src>
import functools

import jax
import jax.numpy as jnp
from jax.experimental import pallas as pl
from jax.experimental.pallas import tpu as pltpu

EPS = 1e-5  # nn.InstanceNorm2d default


def _round_up(x, m):
    return (x + m - 1) // m * m


def _vmem_limit(nbytes):
    # per-call limit sized from the actual blocks (review: no blanket 64 MiB)
    return int(min(64 * 2 ** 20, max(32 * 2 ** 20, int(nbytes))))


# ------------------------- roll direction probe -----------------------------

@functools.lru_cache(maxsize=None)
def _roll_mode():
    """Determine pltpu.roll direction once (robust to either convention)."""
    try:
        def k(x_ref, o_ref):
            o_ref[...] = pltpu.roll(x_ref[...], 1, axis=0)

        x = (jnp.arange(16, dtype=jnp.float32).reshape(16, 1)
             * jnp.ones((1, 128), jnp.float32))
        out = pl.pallas_call(
            k, out_shape=jax.ShapeDtypeStruct((16, 128), jnp.float32))(x)
        if bool(jnp.array_equal(out, jnp.roll(x, 1, axis=0))):
            return "jnp"
        if bool(jnp.array_equal(out, jnp.roll(x, -1, axis=0))):
            return "neg"
    except Exception:  # pragma: no cover - extremely defensive
        pass
    return "concat"


def _shift_rows(a, s, length, roll_mode):
    """Return b with b[p] = a[(p + s) % length] (rows shifted up by s)."""
    if s == 0:
        return a
    s = s % length
    if roll_mode == "jnp":
        return pltpu.roll(a, length - s, axis=0)
    if roll_mode == "neg":
        return pltpu.roll(a, s, axis=0)
    return jnp.concatenate([a[s:], a[:s]], axis=0)


# ----------------------------- Pallas kernels -------------------------------

def _conv_tap_kernel(*refs, kw, norm, n_phase, activation, has_res, roll_mode):
    """Fused stride-1 'valid' conv over a whole (padded) image.

    refs: x (1,Hp,Wp,Cin) bf16, w (T,Cin,Np) bf16, b (1,Np) f32,
          [res (1,Ho,Wo,Np) bf16,] out (1,Ho,Wo,Np)
    Per tap t=(i,j): matmul over the *flat* padded rows, then shift the f32
    partial result by i*Wp+j rows (XLU roll); garbage lands in cropped rows.
    Epilogue: optional InstanceNorm (+ReLU / +residual) on the f32 accumulator,
    optional tanh.
    """
    if has_res:
        x_ref, w_ref, b_ref, r_ref, o_ref = refs
    else:
        x_ref, w_ref, b_ref, o_ref = refs
        r_ref = None

    _, Hp, Wp, Cin = x_ref.shape
    taps = w_ref.shape[0]
    _, Ho, Wo, Np = o_ref.shape
    L = Hp * Wp

    xflat = x_ref[...].reshape(L, Cin)          # layout-preserving (Wp % 8 == 0)

    acc = jnp.zeros((L, Np), jnp.float32)
    for t in range(taps):
        i, j = divmod(t, kw)
        part = jnp.dot(xflat, w_ref[t], preferred_element_type=jnp.float32)
        acc = acc + _shift_rows(part, i * Wp + j, L, roll_mode)
    acc = acc + b_ref[...]

    out = acc.reshape(Hp, Wp, Np)[:Ho, :Wo, :]   # crop padded rows / cols

    if norm is not None:
        cnt = float(Ho * Wo * n_phase)

        def pooled_mean(v):                      # v: (Ho, Wo, Np) f32
            s = jnp.sum(v, axis=(0, 1), keepdims=True)        # (1, 1, Np)
            if n_phase > 1:                      # pool across phase-major blocks
                c = Np // n_phase
                sp = s[:, :, 0:c]
                for p in range(1, n_phase):
                    sp = sp + s[:, :, p * c:(p + 1) * c]
                s = jnp.concatenate([sp] * n_phase, axis=2)
            return s * (1.0 / cnt)

        mean = pooled_mean(out)
        xc = out - mean
        var = pooled_mean(xc * xc)
        out = xc * jax.lax.rsqrt(var + EPS)
        if norm == "in_relu":
            out = jnp.maximum(out, 0.0)

    if has_res:
        out = out + r_ref[0].astype(jnp.float32)

    if activation == "tanh":
        out = jnp.tanh(out)

    o_ref[...] = out[None].astype(o_ref.dtype)


def _matmul_bias_kernel(a_ref, w_ref, b_ref, o_ref):
    acc = jnp.dot(a_ref[...], w_ref[...], preferred_element_type=jnp.float32)
    o_ref[...] = (acc + b_ref[...]).astype(o_ref.dtype)


def _instnorm_kernel(x_ref, o_ref, *, relu):
    x = x_ref[...].astype(jnp.float32)           # (1, HW, C)
    mean = jnp.mean(x, axis=1, keepdims=True)
    xc = x - mean
    var = jnp.mean(xc * xc, axis=1, keepdims=True)
    y = xc * jax.lax.rsqrt(var + EPS)
    if relu:
        y = jnp.maximum(y, 0.0)
    o_ref[...] = y.astype(o_ref.dtype)


# ----------------------------- kernel wrappers -------------------------------

def conv2d_taps(x_pad, w_taps, bias, *, kh, kw, norm=None, n_phase=1,
                residual=None, activation=None, out_dtype=jnp.bfloat16):
    """Fused stride-1 'valid' conv of an already spatially padded NHWC input.

    x_pad: (B, Hp, Wp, Cin); w_taps: (kh*kw, Cin, Cout); bias: (Cout,)
    Grid = (B,); one whole image per step (review items 1 & 2).
    """
    B, Hp, Wp0, Cin = x_pad.shape
    T, _, Cout = w_taps.shape
    assert T == kh * kw
    Ho, Wo = Hp - kh + 1, Wp0 - kw + 1
    Np = _round_up(Cout, 128)                    # lane-dense output channels
    if n_phase > 1:
        assert Np == Cout, "phase-pooled IN requires unpadded channels"

    # width padded to a multiple of 8 so the in-kernel flat reshape is free
    Wp = _round_up(Wp0, 8)
    if Wp != Wp0:
        x_pad = jnp.pad(x_pad, ((0, 0), (0, 0), (0, Wp - Wp0), (0, 0)))
    x_pad = x_pad.astype(jnp.bfloat16)

    w_p = w_taps if Np == Cout else jnp.pad(w_taps, ((0, 0), (0, 0), (0, Np - Cout)))
    w_p = w_p.astype(jnp.bfloat16)
    b_p = jnp.pad(bias, (0, Np - Cout)).astype(jnp.float32).reshape(1, Np)

    has_res = residual is not None
    if has_res:
        assert residual.shape == (B, Ho, Wo, Np)
        residual = residual.astype(jnp.bfloat16)

    kernel = functools.partial(
        _conv_tap_kernel, kw=kw, norm=norm, n_phase=n_phase,
        activation=activation, has_res=has_res, roll_mode=_roll_mode())

    in_specs = [
        pl.BlockSpec((1, Hp, Wp, Cin), lambda b: (b, 0, 0, 0)),
        pl.BlockSpec((T, Cin, Np), lambda b: (0, 0, 0)),
        pl.BlockSpec((1, Np), lambda b: (0, 0)),
    ]
    args = [x_pad, w_p, b_p]
    if has_res:
        in_specs.append(pl.BlockSpec((1, Ho, Wo, Np), lambda b: (b, 0, 0, 0)))
        args.append(residual)

    x_bytes = Hp * Wp * Cin * 2
    w_bytes = T * Cin * Np * 2
    o_bytes = Ho * Wo * Np * jnp.dtype(out_dtype).itemsize
    r_bytes = Ho * Wo * Np * 2 if has_res else 0
    acc_bytes = Hp * Wp * Np * 4
    vmem = _vmem_limit(2 * (x_bytes + w_bytes + o_bytes + r_bytes) + 3 * acc_bytes)

    cost = pl.CostEstimate(
        flops=2 * B * Hp * Wp * T * Cin * Np,
        transcendentals=(B * Ho * Wo * Np if activation == "tanh" else 0),
        bytes_accessed=B * (x_bytes + o_bytes + r_bytes) + w_bytes)

    return pl.pallas_call(
        kernel,
        out_shape=jax.ShapeDtypeStruct((B, Ho, Wo, Np), out_dtype),
        grid=(B,),
        in_specs=in_specs,
        out_specs=pl.BlockSpec((1, Ho, Wo, Np), lambda b: (b, 0, 0, 0)),
        compiler_params=pltpu.CompilerParams(
            dimension_semantics=("parallel",), vmem_limit_bytes=vmem),
        cost_estimate=cost,
    )(*args)


def matmul_bias(a, w, b, *, out_dtype=jnp.bfloat16):
    """(M,K) @ (K,N) + b, bf16 operands / f32 accumulation (first conv only)."""
    M, K = a.shape
    _, N = w.shape
    Kp = _round_up(K, 128)
    if N % 256 == 0:
        tn = 256
    elif N % 128 == 0:
        tn = 128
    else:
        tn = N
    tm = min(1024, _round_up(M, 8))
    Mp = _round_up(M, tm)

    a_p = jnp.pad(a, ((0, Mp - M), (0, Kp - K))).astype(jnp.bfloat16)
    w_p = jnp.pad(w, ((0, Kp - K), (0, 0))).astype(jnp.bfloat16)
    b_p = b.astype(jnp.float32).reshape(1, N)

    vmem = _vmem_limit(2 * (tm * Kp * 2 + Kp * tn * 2) + 3 * tm * tn * 4)
    cost = pl.CostEstimate(flops=2 * Mp * Kp * N, transcendentals=0,
                           bytes_accessed=2 * (Mp * Kp + Kp * N) + 2 * Mp * N)

    out = pl.pallas_call(
        _matmul_bias_kernel,
        out_shape=jax.ShapeDtypeStruct((Mp, N), out_dtype),
        grid=(Mp // tm, N // tn),
        in_specs=[
            pl.BlockSpec((tm, Kp), lambda i, j: (i, 0)),
            pl.BlockSpec((Kp, tn), lambda i, j: (0, j)),
            pl.BlockSpec((1, tn), lambda i, j: (0, j)),
        ],
        out_specs=pl.BlockSpec((tm, tn), lambda i, j: (i, j)),
        compiler_params=pltpu.CompilerParams(
            dimension_semantics=("parallel", "parallel"), vmem_limit_bytes=vmem),
        cost_estimate=cost,
    )(a_p, w_p, b_p)
    return out[:M] if Mp != M else out


def instance_norm(x, *, relu=False):
    """Standalone InstanceNorm(+ReLU); only used after the first (im2col) conv."""
    B, H, W, C = x.shape
    HW = H * W
    x3 = x.reshape(B, HW, C)
    vmem = _vmem_limit(6 * HW * C * x.dtype.itemsize)
    out = pl.pallas_call(
        functools.partial(_instnorm_kernel, relu=relu),
        out_shape=jax.ShapeDtypeStruct((B, HW, C), x.dtype),
        grid=(B,),
        in_specs=[pl.BlockSpec((1, HW, C), lambda b: (b, 0, 0))],
        out_specs=pl.BlockSpec((1, HW, C), lambda b: (b, 0, 0)),
        compiler_params=pltpu.CompilerParams(
            dimension_semantics=("parallel",), vmem_limit_bytes=vmem),
    )(x3)
    return out.reshape(B, H, W, C)


# --------------------------- conv layer lowerings ----------------------------

def conv2d_reflect(x, weight, bias, *, pad, norm=None, residual=None,
                   activation=None, out_dtype=jnp.bfloat16):
    """ReflectionPad2d(pad) + Conv2d(stride=1).  weight: (Cout, Cin, kh, kw)."""
    C_out, C_in, kh, kw = weight.shape
    x_p = jnp.pad(x, ((0, 0), (pad, pad), (pad, pad), (0, 0)), mode="reflect")
    w_taps = jnp.transpose(weight, (2, 3, 1, 0)).reshape(kh * kw, C_in, C_out)
    return conv2d_taps(x_p, w_taps, bias, kh=kh, kw=kw, norm=norm,
                       residual=residual, activation=activation,
                       out_dtype=out_dtype)


def conv2d_im2col_reflect(x, weight, bias, *, pad, out_dtype=jnp.bfloat16):
    """Conv2d(stride=1) via explicit patch matrix; only for tiny Cin (first conv)."""
    C_out, C_in, kh, kw = weight.shape
    x_p = jnp.pad(x, ((0, 0), (pad, pad), (pad, pad), (0, 0)), mode="reflect")
    B, Hp, Wp, _ = x_p.shape
    Ho, Wo = Hp - kh + 1, Wp - kw + 1
    cols = [x_p[:, i:i + Ho, j:j + Wo, :] for i in range(kh) for j in range(kw)]
    patches = jnp.stack(cols, axis=3)                 # (B, Ho, Wo, kh*kw, Cin)
    a = patches.reshape(B * Ho * Wo, kh * kw * C_in)
    w2 = jnp.transpose(weight, (2, 3, 1, 0)).reshape(kh * kw * C_in, C_out)
    out = matmul_bias(a, w2, bias, out_dtype=out_dtype)
    return out.reshape(B, Ho, Wo, C_out)


def conv2d_stride2(x, weight, bias, *, norm="in_relu", out_dtype=jnp.bfloat16):
    """Conv2d(k=3, s=2, p=1) via space-to-depth + fused 2x2-tap conv."""
    C_out, C_in, kh, kw = weight.shape
    assert (kh, kw) == (3, 3)
    B, H, W, _ = x.shape
    Ho, Wo = (H + 1) // 2, (W + 1) // 2
    Hp, Wp = 2 * Ho + 2, 2 * Wo + 2               # conv pad 1 + even-extent pad
    x_p = jnp.pad(x, ((0, 0), (1, Hp - H - 1), (1, Wp - W - 1), (0, 0)))
    phases = [x_p[:, pa::2, pb::2, :] for pa in (0, 1) for pb in (0, 1)]
    xs = jnp.concatenate(phases, axis=-1)         # (B, Ho+1, Wo+1, 4*Cin)

    # 2x2-tap weights over the phase-stacked input (zero blocks where
    # 2*d + phase exceeds the 3x3 kernel); exactly equivalent to the s=2 conv.
    wt = jnp.zeros((2, 2, 2, 2, C_in, C_out), weight.dtype)  # (da,db,pa,pb,ci,co)
    for da in (0, 1):
        for db in (0, 1):
            for pa in (0, 1):
                for pb in (0, 1):
                    a, b2 = 2 * da + pa, 2 * db + pb
                    if a > 2 or b2 > 2:
                        continue
                    wt = wt.at[da, db, pa, pb].set(jnp.transpose(weight[:, :, a, b2]))
    w_taps = wt.reshape(4, 4 * C_in, C_out)
    return conv2d_taps(xs, w_taps, bias, kh=2, kw=2, norm=norm,
                       out_dtype=out_dtype)


def conv_transpose2d(x, weight, bias, *, norm="in_relu", out_dtype=jnp.bfloat16):
    """ConvTranspose2d(k=3, s=2, p=1, output_padding=1) via the exact 4-phase
    sub-pixel decomposition -> one fused 2x2 stride-1 conv producing phase-major
    4*Cout channels (IN+ReLU fused pre-interleave, stats pooled over phases)."""
    C_in, C_out, kh, kw = weight.shape
    assert (kh, kw) == (3, 3)
    B, H, W, _ = x.shape
    x_p = jnp.pad(x, ((0, 0), (0, 1), (0, 1), (0, 0)))    # zero bottom/right row

    def krow(r, d):      # kernel row used by output phase r, tap offset d
        if r == 0:
            return 1 if d == 0 else None
        return 2 if d == 0 else 0

    wk = jnp.zeros((2, 2, C_in, 2, 2, C_out), weight.dtype)  # (da,db,ci,r,s,co)
    for r in (0, 1):
        for s in (0, 1):
            for da in (0, 1):
                for db in (0, 1):
                    ra, rb = krow(r, da), krow(s, db)
                    if ra is None or rb is None:
                        continue
                    wk = wk.at[da, db, :, r, s, :].set(weight[:, :, ra, rb])
    w_taps = wk.reshape(4, C_in, 4 * C_out)
    b4 = jnp.tile(bias, 4)

    y = conv2d_taps(x_p, w_taps, b4, kh=2, kw=2, norm=norm, n_phase=4,
                    out_dtype=out_dtype)                    # (B, H, W, 4*Cout)
    y = y.reshape(B, H, W, 2, 2, C_out)
    y = jnp.transpose(y, (0, 1, 3, 2, 4, 5)).reshape(B, 2 * H, 2 * W, C_out)
    return y


# --------------------------------- parameters --------------------------------

def _conv_params(key, c_out, c_in, kh, kw):
    k1, k2 = jax.random.split(key)
    fan_in = c_in * kh * kw
    w = jax.random.normal(k1, (c_out, c_in, kh, kw), jnp.float32) / jnp.sqrt(fan_in)
    b = jax.random.normal(k2, (c_out,), jnp.float32) * 0.01
    return w, b


def _convT_params(key, c_in, c_out, kh, kw):
    k1, k2 = jax.random.split(key)
    fan_in = c_in * kh * kw
    w = jax.random.normal(k1, (c_in, c_out, kh, kw), jnp.float32) / jnp.sqrt(fan_in)
    b = jax.random.normal(k2, (c_out,), jnp.float32) * 0.01
    return w, b


def init_generator_params(key, input_nc, output_nc, n_residual_blocks):
    keys = iter(jax.random.split(key, 64))
    p = {"c0": _conv_params(next(keys), 64, input_nc, 7, 7)}

    in_f = 64
    p["down"] = []
    for _ in range(2):
        out_f = in_f * 2
        p["down"].append(_conv_params(next(keys), out_f, in_f, 3, 3))
        in_f = out_f

    p["res"] = []
    for _ in range(n_residual_blocks):
        p["res"].append((_conv_params(next(keys), in_f, in_f, 3, 3),
                         _conv_params(next(keys), in_f, in_f, 3, 3)))

    p["up"] = []
    for _ in range(2):
        out_f = in_f // 2
        p["up"].append(_convT_params(next(keys), in_f, out_f, 3, 3))
        in_f = out_f

    p["cout"] = _conv_params(next(keys), output_nc, 64, 7, 7)
    return p


# ---------------------------------- forward ----------------------------------

def generator_forward(params, x_nchw):
    x = jnp.transpose(x_nchw, (0, 2, 3, 1)).astype(jnp.bfloat16)  # NCHW -> NHWC

    # ReflectionPad(3) + Conv7x7(->64) + IN + ReLU (tiny Cin -> im2col path)
    w, b = params["c0"]
    x = conv2d_im2col_reflect(x, w, b, pad=3)
    x = instance_norm(x, relu=True)

    # 2x downsampling: Conv3x3 s=2 p=1 + fused IN + ReLU
    for (w, b) in params["down"]:
        x = conv2d_stride2(x, w, b, norm="in_relu")

    # residual blocks: x + IN(Conv(ReLU(IN(Conv(reflpad(x))))))  (IN fused)
    for (w1, b1), (w2, b2) in params["res"]:
        y = conv2d_reflect(x, w1, b1, pad=1, norm="in_relu")
        x = conv2d_reflect(y, w2, b2, pad=1, norm="in", residual=x)

    # 2x upsampling: ConvTranspose3x3 s=2 p=1 op=1 + fused (phase-pooled) IN+ReLU
    for (w, b) in params["up"]:
        x = conv_transpose2d(x, w, b, norm="in_relu")

    # ReflectionPad(3) + Conv7x7(->output_nc) + Tanh (tanh fused into the conv)
    w, b = params["cout"]
    y = conv2d_reflect(x, w, b, pad=3, activation="tanh", out_dtype=jnp.float32)
    y = y[..., : w.shape[0]]                    # crop lane padding to output_nc
    return jnp.transpose(y, (0, 3, 1, 2))       # back to NCHW, f32


# -------------------------- XLA reference / self-test ------------------------

def _ref_conv(x, w, b, *, stride=1, padding="VALID"):
    w_hwio = jnp.transpose(w, (2, 3, 1, 0))
    y = jax.lax.conv_general_dilated(
        x, w_hwio, window_strides=(stride, stride), padding=padding,
        dimension_numbers=("NHWC", "HWIO", "NHWC"))
    return y + b.reshape(1, 1, 1, -1)


def _ref_reflect_conv(x, w, b, pad):
    x_p = jnp.pad(x, ((0, 0), (pad, pad), (pad, pad), (0, 0)), mode="reflect")
    return _ref_conv(x_p, w, b)


def _ref_conv_s2(x, w, b):
    x_p = jnp.pad(x, ((0, 0), (1, 1), (1, 1), (0, 0)))
    return _ref_conv(x_p, w, b, stride=2)


def _ref_conv_transpose(x, w, b):
    # PyTorch ConvTranspose2d(k=3, s=2, p=1, output_padding=1)
    w_hwio = jnp.transpose(w[:, :, ::-1, ::-1], (2, 3, 0, 1))
    y = jax.lax.conv_general_dilated(
        x, w_hwio, window_strides=(1, 1), padding=((1, 2), (1, 2)),
        lhs_dilation=(2, 2), dimension_numbers=("NHWC", "HWIO", "NHWC"))
    return y + b.reshape(1, 1, 1, -1)


def _ref_instnorm(x, relu=False):
    mean = jnp.mean(x, axis=(1, 2), keepdims=True)
    var = jnp.mean((x - mean) ** 2, axis=(1, 2), keepdims=True)
    y = (x - mean) * jax.lax.rsqrt(var + EPS)
    return jnp.maximum(y, 0.0) if relu else y


def _expect_close(name, got, want, tol=5e-2):
    err = float(jnp.max(jnp.abs(got.astype(jnp.float32) - want.astype(jnp.float32))))
    assert err < tol, f"{name}: max abs err {err}"


def _self_test():
    q = lambda a: a.astype(jnp.bfloat16).astype(jnp.float32)
    keys = iter(jax.random.split(jax.random.PRNGKey(0), 32))

    # (1) full ResnetBlock: reflect 3x3 + IN + ReLU, reflect 3x3 + IN + residual
    C = 128
    x = jax.random.normal(next(keys), (1, 6, 7, C), jnp.float32).astype(jnp.bfloat16)
    w1, b1 = _conv_params(next(keys), C, C, 3, 3)
    w2, b2 = _conv_params(next(keys), C, C, 3, 3)
    y1 = conv2d_reflect(x, w1, b1, pad=1, norm="in_relu", out_dtype=jnp.float32)
    y2 = conv2d_reflect(y1, w2, b2, pad=1, norm="in", residual=x,
                        out_dtype=jnp.float32)
    xf = x.astype(jnp.float32)
    y1r = _ref_instnorm(_ref_reflect_conv(xf, q(w1), b1, 1), relu=True)
    y2r = xf + _ref_instnorm(_ref_reflect_conv(q(y1r), q(w2), b2, 1))
    _expect_close("resblock", y2, y2r)

    # (2) stride-2 conv lowering (odd spatial extents)
    x = jax.random.normal(next(keys), (1, 9, 11, 16), jnp.float32).astype(jnp.bfloat16)
    w, b = _conv_params(next(keys), 24, 16, 3, 3)
    got = conv2d_stride2(x, w, b, norm=None, out_dtype=jnp.float32)[..., :24]
    _expect_close("conv_stride2", got, _ref_conv_s2(x.astype(jnp.float32), q(w), b))

    # (3) conv-transpose lowering + phase-pooled IN + ReLU
    x = jax.random.normal(next(keys), (1, 5, 6, 16), jnp.float32).astype(jnp.bfloat16)
    w, b = _convT_params(next(keys), 16, 32, 3, 3)
    got = conv_transpose2d(x, w, b, norm="in_relu", out_dtype=jnp.float32)
    want = _ref_instnorm(_ref_conv_transpose(x.astype(jnp.float32), q(w), b), relu=True)
    _expect_close("conv_transpose", got, want)

    # (4) final 7x7 reflect conv + tanh
    x = jax.random.normal(next(keys), (1, 10, 11, 8), jnp.float32).astype(jnp.bfloat16)
    w, b = _conv_params(next(keys), 5, 8, 7, 7)
    got = conv2d_reflect(x, w, b, pad=3, activation="tanh",
                         out_dtype=jnp.float32)[..., :5]
    want = jnp.tanh(_ref_reflect_conv(x.astype(jnp.float32), q(w), b, 3))
    _expect_close("conv7x7_tanh", got, want)


# ------------------------------------ main ------------------------------------

if __name__ == "__main__":
    _self_test()   # numerically verify every lowering against lax references

    input_nc, output_nc = 3, 3
    n_residual_blocks = 2   # constructor arg; kept small for a fast demo run
    B, H, W = 2, 16, 16

    key = jax.random.PRNGKey(0)
    k_param, k_x = jax.random.split(key)
    params = init_generator_params(k_param, input_nc, output_nc,
                                   n_residual_blocks)
    x = jax.random.normal(k_x, (B, input_nc, H, W), jnp.float32)

    fwd = jax.jit(generator_forward)
    out = jax.block_until_ready(fwd(params, x))

    assert out.shape == (B, output_nc, H, W), out.shape
    assert bool(jnp.all(jnp.isfinite(out)))
    assert bool(jnp.all(jnp.abs(out) <= 1.0))   # tanh output range
    print("KERNEL_OK")
</pallas_src>

<mosaic_0001>
module attributes {stable_mosaic.version = 11 : i64} {
  func.func @k(%arg0: memref<16x128xf32, #tpu.memory_space<vmem>>, %arg1: memref<16x128xf32, #tpu.memory_space<vmem>>) attributes {dimension_semantics = [], scalar_prefetch = 0 : i64, scratch_operands = 0 : i64, tpu.core_type = #tpu.core_type<tc>} {
    %c0 = arith.constant 0 : index
    %c0_0 = arith.constant 0 : index
    %0 = vector.load %arg0[%c0, %c0_0] : memref<16x128xf32, #tpu.memory_space<vmem>>, vector<16x128xf32>
    %c1_i32 = arith.constant 1 : i32
    %1 = tpu.dynamic_rotate %0 by %c1_i32 dim 0 : vector<16x128xf32>, i32 -> vector<16x128xf32>
    %c0_1 = arith.constant 0 : index
    %c0_2 = arith.constant 0 : index
    %2 = vector.load %arg1[%c0_1, %c0_2] : memref<16x128xf32, #tpu.memory_space<vmem>>, vector<16x128xf32>
    tpu.vector_store %arg1[%c0_1, %c0_2], %1 {strides = array<i32>} : memref<16x128xf32, #tpu.memory_space<vmem>>, vector<16x128xf32>,
    return
  }
}

module attributes {stable_mosaic.version = 11 : i64} {
  func.func @_conv_tap_kernel(%arg0: i32, %arg1: memref<1x8x16x128xbf16, #tpu.memory_space<vmem>>, %arg2: memref<9x128x128xbf16, #tpu.memory_space<vmem>>, %arg3: memref<1x128xf32, #tpu.memory_space<vmem>>, %arg4: memref<1x6x7x128xf32, #tpu.memory_space<vmem>>) attributes {dimension_semantics = [#tpu.dimension_semantics<parallel>], iteration_bounds = array<i64: 1>, scalar_prefetch = 0 : i64, scratch_operands = 0 : i64, tpu.core_type = #tpu.core_type<tc>, window_params = [{transform_indices = @transform_0, window_bounds = array<i64: 1, 8, 16, 128>}, {pipeline_mode = #tpu.pipeline_mode<synchronous>, transform_indices = @transform_1, window_bounds = array<i64: 9, 128, 128>}, {pipeline_mode = #tpu.pipeline_mode<synchronous>, transform_indices = @transform_2, window_bounds = array<i64: 1, 128>}, {transform_indices = @transform_3, window_bounds = array<i64: 1, 6, 7, 128>}]} {
    %c0 = arith.constant 0 : index
    %c0_0 = arith.constant 0 : index
    %c0_1 = arith.constant 0 : index
    %c0_2 = arith.constant 0 : index
    %0 = vector.load %arg1[%c0, %c0_0, %c0_1, %c0_2] : memref<1x8x16x128xbf16, #tpu.memory_space<vmem>>, vector<1x8x16x128xbf16>
    %1 = vector.shape_cast %0 : vector<1x8x16x128xbf16> to vector<128x128xbf16>
    %cst = arith.constant 0.000000e+00 : f32
    %2 = vector.broadcast %cst : f32 to vector<128x128xf32>
    %c0_3 = arith.constant 0 : index
    %c0_4 = arith.constant 0 : index
    %c0_5 = arith.constant 0 : index
    %3 = vector.load %arg2[%c0_3, %c0_4, %c0_5] : memref<9x128x128xbf16, #tpu.memory_space<vmem>>, vector<1x128x128xbf16>
    %4 = vector.shape_cast %3 : vector<1x128x128xbf16> to vector<128x128xbf16>
    %cst_6 = arith.constant dense<0.000000e+00> : vector<128x128xf32>
    %5 = tpu.matmul %1, %4, %cst_6 {dimension_numbers = #tpu.dot_dimension_numbers<[1], [0], [0], [1], [0, 0, 1, 1], [], []>} : vector<128x128xbf16>, vector<128x128xbf16>, vector<128x128xf32> -> vector<128x128xf32>
    %6 = arith.addf %2, %5 : vector<128x128xf32>
    %c1 = arith.constant 1 : index
    %c0_7 = arith.constant 0 : index
    %c0_8 = arith.constant 0 : index
    %7 = vector.load %arg2[%c1, %c0_7, %c0_8] : memref<9x128x128xbf16, #tpu.memory_space<vmem>>, vector<1x128x128xbf16>
    %8 = vector.shape_cast %7 : vector<1x128x128xbf16> to vector<128x128xbf16>
    %cst_9 = arith.constant dense<0.000000e+00> : vector<128x128xf32>
    %9 = tpu.matmul %1, %8, %cst_9 {dimension_numbers = #tpu.dot_dimension_numbers<[1], [0], [0], [1], [0, 0, 1, 1], [], []>} : vector<128x128xbf16>, vector<128x128xbf16>, vector<128x128xf32> -> vector<128x128xf32>
    %10 = vector.extract_strided_slice %9 {offsets = [1, 0], sizes = [127, 128], strides = [1, 1]} : vector<128x128xf32> to vector<127x128xf32>
    %11 = vector.extract_strided_slice %9 {offsets = [0, 0], sizes = [1, 128], strides = [1, 1]} : vector<128x128xf32> to vector<1x128xf32>
    %12 = tpu.concatenate %10, %11 in 0 : vector<127x128xf32>, vector<1x128xf32> -> vector<128x128xf32>
    %13 = arith.addf %6, %12 : vector<128x128xf32>
    %c2 = arith.constant 2 : index
    %c0_10 = arith.constant 0 : index
    %c0_11 = arith.constant 0 : index
    %14 = vector.load %arg2[%c2, %c0_10, %c0_11] : memref<9x128x128xbf16, #tpu.memory_space<vmem>>, vector<1x128x128xbf16>
    %15 = vector.shape_cast %14 : vector<1x128x128xbf16> to vector<128x128xbf16>
    %cst_12 = arith.constant dense<0.000000e+00> : vector<128x128xf32>
    %16 = tpu.matmul %1, %15, %cst_12 {dimension_numbers = #tpu.dot_dimension_numbers<[1], [0], [0], [1], [0, 0, 1, 1], [], []>} : vector<128x128xbf16>, vector<128x128xbf16>, vector<128x128xf32> -> vector<128x128xf32>
    %17 = vector.extract_strided_slice %16 {offsets = [2, 0], sizes = [126, 128], strides = [1, 1]} : vector<128x128xf32> to vector<126x128xf32>
    %18 = vector.extract_strided_slice %16 {offsets = [0, 0], sizes = [2, 128], strides = [1, 1]} : vector<128x128xf32> to vector<2x128xf32>
    %19 = tpu.concatenate %17, %18 in 0 : vector<126x128xf32>, vector<2x128xf32> -> vector<128x128xf32>
    %20 = arith.addf %13, %19 : vector<128x128xf32>
    %c3 = arith.constant 3 : index
    %c0_13 = arith.constant 0 : index
    %c0_14 = arith.constant 0 : index
    %21 = vector.load %arg2[%c3, %c0_13, %c0_14] : memref<9x128x128xbf16, #tpu.memory_space<vmem>>, vector<1x128x128xbf16>
    %22 = vector.shape_cast %21 : vector<1x128x128xbf16> to vector<128x128xbf16>
    %cst_15 = arith.constant dense<0.000000e+00> : vector<128x128xf32>
    %23 = tpu.matmul %1, %22, %cst_15 {dimension_numbers = #tpu.dot_dimension_numbers<[1], [0], [0], [1], [0, 0, 1, 1], [], []>} : vector<128x128xbf16>, vector<128x128xbf16>, vector<128x128xf32> -> vector<128x128xf32>
    %24 = vector.extract_strided_slice %23 {offsets = [16, 0], sizes = [112, 128], strides = [1, 1]} : vector<128x128xf32> to vector<112x128xf32>
    %25 = vector.extract_strided_slice %23 {offsets = [0, 0], sizes = [16, 128], strides = [1, 1]} : vector<128x128xf32> to vector<16x128xf32>
    %26 = tpu.concatenate %24, %25 in 0 : vector<112x128xf32>, vector<16x128xf32> -> vector<128x128xf32>
    %27 = arith.addf %20, %26 : vector<128x128xf32>
    %c4 = arith.constant 4 : index
    %c0_16 = arith.constant 0 : index
    %c0_17 = arith.constant 0 : index
    %28 = vector.load %arg2[%c4, %c0_16, %c0_17] : memref<9x128x128xbf16, #tpu.memory_space<vmem>>, vector<1x128x128xbf16>
    %29 = vector.shape_cast %28 : vector<1x128x128xbf16> to vector<128x128xbf16>
    %cst_18 = arith.constant dense<0.000000e+00> : vector<128x128xf32>
    %30 = tpu.matmul %1, %29, %cst_18 {dimension_numbers = #tpu.dot_dimension_numbers<[1], [0], [0], [1], [0, 0, 1, 1], [], []>} : vector<128x128xbf16>, vector<128x128xbf16>, vector<128x128xf32> -> vector<128x128xf32>
    %31 = vector.extract_strided_slice %30 {offsets = [17, 0], sizes = [111, 128], strides = [1, 1]} : vector<128x128xf32> to vector<111x128xf32>
    %32 = vector.extract_strided_slice %30 {offsets = [0, 0], sizes = [17, 128], strides = [1, 1]} : vector<128x128xf32> to vector<17x128xf32>
    %33 = tpu.concatenate %31, %32 in 0 : vector<111x128xf32>, vector<17x128xf32> -> vector<128x128xf32>
    %34 = arith.addf %27, %33 : vector<128x128xf32>
    %c5 = arith.constant 5 : index
    %c0_19 = arith.constant 0 : index
    %c0_20 = arith.constant 0 : index
    %35 = vector.load %arg2[%c5, %c0_19, %c0_20] : memref<9x128x128xbf16, #tpu.memory_space<vmem>>, vector<1x128x128xbf16>
    %36 = vector.shape_cast %35 : vector<1x128x128xbf16> to vector<128x128xbf16>
    %cst_21 = arith.constant dense<0.000000e+00> : vector<128x128xf32>
    %37 = tpu.matmul %1, %36, %cst_21 {dimension_numbers = #tpu.dot_dimension_numbers<[1], [0], [0], [1], [0, 0, 1, 1], [], []>} : vector<128x128xbf16>, vector<128x128xbf16>, vector<128x128xf32> -> vector<128x128xf32>
    %38 = vector.extract_strided_slice %37 {offsets = [18, 0], sizes = [110, 128], strides = [1, 1]} : vector<128x128xf32> to vector<110x128xf32>
    %39 = vector.extract_strided_slice %37 {offsets = [0, 0], sizes = [18, 128], strides = [1, 1]} : vector<128x128xf32> to vector<18x128xf32>
    %40 = tpu.concatenate %38, %39 in 0 : vector<110x128xf32>, vector<18x128xf32> -> vector<128x128xf32>
    %41 = arith.addf %34, %40 : vector<128x128xf32>
    %c6 = arith.constant 6 : index
    %c0_22 = arith.constant 0 : index
    %c0_23 = arith.constant 0 : index
    %42 = vector.load %arg2[%c6, %c0_22, %c0_23] : memref<9x128x128xbf16, #tpu.memory_space<vmem>>, vector<1x128x128xbf16>
    %43 = vector.shape_cast %42 : vector<1x128x128xbf16> to vector<128x128xbf16>
    %cst_24 = arith.constant dense<0.000000e+00> : vector<128x128xf32>
    %44 = tpu.matmul %1, %43, %cst_24 {dimension_numbers = #tpu.dot_dimension_numbers<[1], [0], [0], [1], [0, 0, 1, 1], [], []>} : vector<128x128xbf16>, vector<128x128xbf16>, vector<128x128xf32> -> vector<128x128xf32>
    %45 = vector.extract_strided_slice %44 {offsets = [32, 0], sizes = [96, 128], strides = [1, 1]} : vector<128x128xf32> to vector<96x128xf32>
    %46 = vector.extract_strided_slice %44 {offsets = [0, 0], sizes = [32, 128], strides = [1, 1]} : vector<128x128xf32> to vector<32x128xf32>
    %47 = tpu.concatenate %45, %46 in 0 : vector<96x128xf32>, vector<32x128xf32> -> vector<128x128xf32>
    %48 = arith.addf %41, %47 : vector<128x128xf32>
    %c7 = arith.constant 7 : index
    %c0_25 = arith.constant 0 : index
    %c0_26 = arith.constant 0 : index
    %49 = vector.load %arg2[%c7, %c0_25, %c0_26] : memref<9x128x128xbf16, #tpu.memory_space<vmem>>, vector<1x128x128xbf16>
    %50 = vector.shape_cast %49 : vector<1x128x128xbf16> to vector<128x128xbf16>
    %cst_27 = arith.constant dense<0.000000e+00> : vector<128x128xf32>
    %51 = tpu.matmul %1, %50, %cst_27 {dimension_numbers = #tpu.dot_dimension_numbers<[1], [0], [0], [1], [0, 0, 1, 1], [], []>} : vector<128x128xbf16>, vector<128x128xbf16>, vector<128x128xf32> -> vector<128x128xf32>
    %52 = vector.extract_strided_slice %51 {offsets = [33, 0], sizes = [95, 128], strides = [1, 1]} : vector<128x128xf32> to vector<95x128xf32>
    %53 = vector.extract_strided_slice %51 {offsets = [0, 0], sizes = [33, 128], strides = [1, 1]} : vector<128x128xf32> to vector<33x128xf32>
    %54 = tpu.concatenate %52, %53 in 0 : vector<95x128xf32>, vector<33x128xf32> -> vector<128x128xf32>
    %55 = arith.addf %48, %54 : vector<128x128xf32>
    %c8 = arith.constant 8 : index
    %c0_28 = arith.constant 0 : index
    %c0_29 = arith.constant 0 : index
    %56 = vector.load %arg2[%c8, %c0_28, %c0_29] : memref<9x128x128xbf16, #tpu.memory_space<vmem>>, vector<1x128x128xbf16>
    %57 = vector.shape_cast %56 : vector<1x128x128xbf16> to vector<128x128xbf16>
    %cst_30 = arith.constant dense<0.000000e+00> : vector<128x128xf32>
    %58 = tpu.matmul %1, %57, %cst_30 {dimension_numbers = #tpu.dot_dimension_numbers<[1], [0], [0], [1], [0, 0, 1, 1], [], []>} : vector<128x128xbf16>, vector<128x128xbf16>, vector<128x128xf32> -> vector<128x128xf32>
    %59 = vector.extract_strided_slice %58 {offsets = [34, 0], sizes = [94, 128], strides = [1, 1]} : vector<128x128xf32> to vector<94x128xf32>
    %60 = vector.extract_strided_slice %58 {offsets = [0, 0], sizes = [34, 128], strides = [1, 1]} : vector<128x128xf32> to vector<34x128xf32>
    %61 = tpu.concatenate %59, %60 in 0 : vector<94x128xf32>, vector<34x128xf32> -> vector<128x128xf32>
    %62 = arith.addf %55, %61 : vector<128x128xf32>
    %c0_31 = arith.constant 0 : index
    %c0_32 = arith.constant 0 : index
    %63 = vector.load %arg3[%c0_31, %c0_32] : memref<1x128xf32, #tpu.memory_space<vmem>>, vector<1x128xf32>
    %64 = vector.broadcast %63 : vector<1x128xf32> to vector<128x128xf32>
    %65 = arith.addf %62, %64 : vector<128x128xf32>
    %66 = vector.shape_cast %65 : vector<128x128xf32> to vector<8x16x128xf32>
    %67 = vector.extract_strided_slice %66 {offsets = [0, 0, 0], sizes = [6, 7, 128], strides = [1, 1, 1]} : vector<8x16x128xf32> to vector<6x7x128xf32>
    %cst_33 = arith.constant dense<0.000000e+00> : vector<128xf32>
    %68 = vector.multi_reduction <add>, %67, %cst_33 [0, 1] : vector<6x7x128xf32> to vector<128xf32>
    %69 = vector.shape_cast %68 : vector<128xf32> to vector<1x1x128xf32>
    %cst_34 = arith.constant 0.0238095243 : f32
    %70 = vector.broadcast %cst_34 : f32 to vector<1x1x128xf32>
    %71 = arith.mulf %69, %70 : vector<1x1x128xf32>
    %72 = vector.broadcast %71 : vector<1x1x128xf32> to vector<6x7x128xf32>
    %73 = arith.subf %67, %72 : vector<6x7x128xf32>
    %74 = arith.mulf %73, %73 : vector<6x7x128xf32>
    %cst_35 = arith.constant dense<0.000000e+00> : vector<128xf32>
    %75 = vector.multi_reduction <add>, %74, %cst_35 [0, 1] : vector<6x7x128xf32> to vector<128xf32>
    %76 = vector.shape_cast %75 : vector<128xf32> to vector<1x1x128xf32>
    %cst_36 = arith.constant 0.0238095243 : f32
    %77 = vector.broadcast %cst_36 : f32 to vector<1x1x128xf32>
    %78 = arith.mulf %76, %77 : vector<1x1x128xf32>
    %cst_37 = arith.constant 9.99999974E-6 : f32
    %79 = vector.broadcast %cst_37 : f32 to vector<1x1x128xf32>
    %80 = arith.addf %78, %79 : vector<1x1x128xf32>
    %81 = math.rsqrt %80 : vector<1x1x128xf32>
    %82 = vector.broadcast %81 : vector<1x1x128xf32> to vector<6x7x128xf32>
    %83 = arith.mulf %73, %82 : vector<6x7x128xf32>
    %cst_38 = arith.constant 0.000000e+00 : f32
    %84 = vector.broadcast %cst_38 : f32 to vector<6x7x128xf32>
    %85 = arith.maximumf %83, %84 : vector<6x7x128xf32>
    %86 = vector.shape_cast %85 : vector<6x7x128xf32> to vector<1x6x7x128xf32>
    %c0_39 = arith.constant 0 : index
    %c0_40 = arith.constant 0 : index
    %c0_41 = arith.constant 0 : index
    %c0_42 = arith.constant 0 : index
    %87 = vector.load %arg4[%c0_39, %c0_40, %c0_41, %c0_42] : memref<1x6x7x128xf32, #tpu.memory_space<vmem>>, vector<1x6x7x128xf32>
    tpu.vector_store %arg4[%c0_39, %c0_40, %c0_41, %c0_42], %86 {strides = array<i32>} : memref<1x6x7x128xf32, #tpu.memory_space<vmem>>, vector<1x6x7x128xf32>,
    return
  }
  func.func @transform_0(%arg0: i32) -> (i32, i32, i32, i32) {
    %c0_i32 = arith.constant 0 : i32
    %c0_i32_0 = arith.constant 0 : i32
    %c0_i32_1 = arith.constant 0 : i32
    %c0_i32_2 = arith.constant 0 : i32
    return %arg0, %c0_i32, %c0_i32_0, %c0_i32_1 : i32, i32, i32, i32
  }
  func.func @transform_1(%arg0: i32) -> (i32, i32, i32) {
    %c0_i32 = arith.constant 0 : i32
    %c0_i32_0 = arith.constant 0 : i32
    %c0_i32_1 = arith.constant 0 : i32
    %c0_i32_2 = arith.constant 0 : i32
    return %c0_i32, %c0_i32_0, %c0_i32_1 : i32, i32, i32
  }
  func.func @transform_2(%arg0: i32) -> (i32, i32) {
    %c0_i32 = arith.constant 0 : i32
    %c0_i32_0 = arith.constant 0 : i32
    %c0_i32_1 = arith.constant 0 : i32
    return %c0_i32, %c0_i32_0 : i32, i32
  }
  func.func @transform_3(%arg0: i32) -> (i32, i32, i32, i32) {
    %c0_i32 = arith.constant 0 : i32
    %c0_i32_0 = arith.constant 0 : i32
    %c0_i32_1 = arith.constant 0 : i32
    %c0_i32_2 = arith.constant 0 : i32
    return %arg0, %c0_i32, %c0_i32_0, %c0_i32_1 : i32, i32, i32, i32
  }
}

</mosaic_0001>

<llo_original>
// kernel: tpu_custom_call.1
$region0: #{tpu_custom_call.1}
  #allocation0 [shape = 'u32[]', space=smem, size = 0x4, offset = 0x4, fixed_abs, tag = 'smem constant byte address 0x4 - core index']
  #allocation1 [shape = 'u32[144,128]{1,0:T(1,128)}', space=vmem, size = 0x12000, scoped, tag = 'internal scratch']
  %s0 = inlined_call_operand.hbm [shape: f32[16,128], index: 0, kind: input, shape index: {}]
  %s1 = inlined_call_operand.hbm [shape: f32[16,128], index: 1, kind: output, shape index: {}]
  %s2 = sld [smem:[#allocation0]]
  $region18: #{tpu_custom_call.1} parent=0
    _
  %s4 = ssub.s32 1, %s2
  %s5 = scalar_select 0, %s4, %s2
  $region1: #{tpu_custom_call.1} parent=0
    #allocation2 [shape = 'u8[8192]{0}', space=vmem, size = 0x2000, scoped, tag = 'input window, operand 0, single buffered']
    #allocation3 [shape = 's32[1]{0}', space=sflag, size = 0x4, scoped, tag = 'scoped memory for tpu_custom_call.1']
    #allocation4 [shape = 's32[1]{0}', space=sflag, size = 0x4, scoped, tag = 'scoped memory for tpu_custom_call.1']
    #allocation5 [shape = 'u8[8192]{0}', space=vmem, size = 0x2000, scoped, tag = 'output window, operand 0, single buffered']
    %6 = vsyncpa [#allocation3], 0
    %7 = vsyncpa [#allocation4], 0
    // Predicated region
    $region2: #{tpu_custom_call.1} parent=1 // pred_check
      _
    $region3: #{tpu_custom_call.1} parent=1 // pred_check_branch
      %9 = sbr.rel (0) target = $region5
    $region4: #{tpu_custom_call.1} parent=1 // pred_region
      %s11 = ssub.s32 256, 256
      %12 = vsyncadd [#allocation3], %s11
      %s13 = sshll.u32 [#allocation2], 4
      %s14 = int_to_ptr.vmem [resolvable:$true] %s13
      %19 = dma.hbm_to_vmem [thread:$0]  %s0, 256, %s14, [#allocation3], 128, 128, 8
    $region5: #{tpu_custom_call.1} parent=1 // pred_fallthru
      _
    // Predicated region
    $region6: #{tpu_custom_call.1} parent=1 // pred_check
      _
    $region7: #{tpu_custom_call.1} parent=1 // pred_check_branch
      %21 = sbr.rel (0) target = $region9
    $region8: #{tpu_custom_call.1} parent=1 // pred_region
      %22 = dma.done [#allocation3], 256
    $region9: #{tpu_custom_call.1} parent=1 // pred_fallthru
      _
    %v23 = vld [vmem:[#allocation2] sm:$0xff]
    %v24 = vld [vmem:[#allocation2 + $0x8] sm:$0xff]
    %v25 = vrot.slane %v23, 7
    %v26 = vrot.slane %v24, 7
    %v27 = vlaneseq
    %v28 = vshrl.u32 %v27, 7
    %vm29 = vcmp.lt.s32.totalorder %v28, 1
    %v30 = vsel %vm29, %v25, %v26
    %v31 = vsel %vm29, %v26, %v25
    %32 = vst [vmem:[#allocation5] sm:$0xff] %v31
    %33 = vst [vmem:[#allocation5 + $0x8] sm:$0xff] %v30
    // Predicated region
    $region10: #{tpu_custom_call.1} parent=1 // pred_check
      _
    $region11: #{tpu_custom_call.1} parent=1 // pred_check_branch
      %35 = sbr.rel (0) target = $region13
    $region12: #{tpu_custom_call.1} parent=1 // pred_region
      %s37 = ssub.s32 256, 256
      %38 = vsyncadd [#allocation4], %s37
      %s39 = sshll.u32 [#allocation5], 4
      %s40 = int_to_ptr.vmem [resolvable:$true] %s39
      %45 = dma.vmem_to_hbm [thread:$0]  %s40, 256, %s1, [#allocation4], 128, 128, 8
    $region13: #{tpu_custom_call.1} parent=1 // pred_fallthru
      _
    // Predicated region
    $region14: #{tpu_custom_call.1} parent=1 // pred_check
      _
    $region15: #{tpu_custom_call.1} parent=1 // pred_check_branch
      %47 = sbr.rel (0) target = $region17
    $region16: #{tpu_custom_call.1} parent=1 // pred_region
      %48 = dma.done [#allocation4], 256
    $region17: #{tpu_custom_call.1} parent=1 // pred_fallthru
      _
    %49 = vsyncpa [#allocation3], 1
    %50 = vsyncpa [#allocation4], 1

// kernel: tpu_custom_call.1
$region0: #{tpu_custom_call.1}
  #allocation0 [shape = 'u32[]', space=smem, size = 0x4, offset = 0x4, fixed_abs, tag = 'smem constant byte address 0x4 - core index']
  #allocation1 [shape = 'u32[144,128]{1,0:T(1,128)}', space=vmem, size = 0x12000, scoped, tag = 'internal scratch']
  %s0 = inlined_call_operand.hbm [shape: bf16[1,8,16,128], index: 0, kind: input, shape index: {}]
  %s1 = inlined_call_operand.hbm [shape: bf16[9,128,128], index: 1, kind: input, shape index: {}]
  %s2 = inlined_call_operand.vmem [shape: f32[1,128], index: 2, kind: input, shape index: {}]
  %s3 = inlined_call_operand.vmem [shape: f32[1,6,7,128], index: 3, kind: output, shape index: {}]
  %s4 = sld [smem:[#allocation0]]
  $region30: #{tpu_custom_call.1} parent=0
    _
  %s6 = ssub.s32 1, %s4
  %s7 = scalar_select 0, %s6, %s4
  $region1: #{tpu_custom_call.1} parent=0
    #allocation2 [shape = 'u8[32768]{0}', space=vmem, size = 0x8000, scoped, tag = 'input window, operand 0, single buffered']
    #allocation3 [shape = 's32[1]{0}', space=sflag, size = 0x4, scoped, tag = 'scoped memory for tpu_custom_call.1']
    #allocation4 [shape = 'u8[294912]{0}', space=vmem, size = 0x48000, scoped, tag = 'input window, operand 1, single buffered']
    #allocation5 [shape = 's32[1]{0}', space=sflag, size = 0x4, scoped, tag = 'scoped memory for tpu_custom_call.1']
    %8 = vsyncpa [#allocation3], 0
    %9 = vsyncpa [#allocation5], 0
    // Predicated region
    $region2: #{tpu_custom_call.1} parent=1 // pred_check
      _
    $region3: #{tpu_custom_call.1} parent=1 // pred_check_branch
      %11 = sbr.rel (0) target = $region5
    $region4: #{tpu_custom_call.1} parent=1 // pred_region
      %s13 = ssub.s32 1024, 1024
      %14 = vsyncadd [#allocation3], %s13
      %s15 = sshll.u32 [#allocation2], 4
      %s16 = int_to_ptr.vmem [resolvable:$true] %s15
      %21 = dma.hbm_to_vmem [thread:$0]  %s0, 1024, %s16, [#allocation3], 64, 64, 4
    $region5: #{tpu_custom_call.1} parent=1 // pred_fallthru
      _
    // Predicated region
    $region6: #{tpu_custom_call.1} parent=1 // pred_check
      _
    $region7: #{tpu_custom_call.1} parent=1 // pred_check_branch
      %23 = sbr.rel (0) target = $region9
    $region8: #{tpu_custom_call.1} parent=1 // pred_region
      %s25 = ssub.s32 9216, 9216
      %26 = vsyncadd [#allocation5], %s25
      %s27 = sshll.u32 [#allocation4], 4
      %s28 = int_to_ptr.vmem [resolvable:$true] %s27
      %33 = dma.hbm_to_vmem [thread:$0]  %s1, 9216, %s28, [#allocation5], 64, 64, 4
    $region9: #{tpu_custom_call.1} parent=1 // pred_fallthru
      _
    // Predicated region
    $region10: #{tpu_custom_call.1} parent=1 // pred_check
      _
    $region11: #{tpu_custom_call.1} parent=1 // pred_check_branch
      %35 = sbr.rel (0) target = $region13
    $region12: #{tpu_custom_call.1} parent=1 // pred_region
      _
    $region13: #{tpu_custom_call.1} parent=1 // pred_fallthru
      _
    // Predicated region
    $region14: #{tpu_custom_call.1} parent=1 // pred_check
      _
    $region15: #{tpu_custom_call.1} parent=1 // pred_check_branch
      %37 = sbr.rel (0) target = $region17
    $region16: #{tpu_custom_call.1} parent=1 // pred_region
      %38 = dma.done [#allocation3], 1024
    $region17: #{tpu_custom_call.1} parent=1 // pred_fallthru
      _
    // Predicated region
    $region18: #{tpu_custom_call.1} parent=1 // pred_check
      _
    $region19: #{tpu_custom_call.1} parent=1 // pred_check_branch
      %40 = sbr.rel (0) target = $region21
    $region20: #{tpu_custom_call.1} parent=1 // pred_region
      %41 = dma.done [#allocation5], 9216
    $region21: #{tpu_custom_call.1} parent=1 // pred_fallthru
      _
    %v43 = vld [vmem:[#allocation2] sm:$0xf]
    %v44 = vld [vmem:[#allocation2 + $0x4] sm:$0xf]
    %v45 = vld [vmem:[#allocation2 + $0x8] sm:$0xf]
    %v46 = vld [vmem:[#allocation2 + $0xc] sm:$0xf]
    %v47 = vld [vmem:[#allocation2 + $0x10] sm:$0xf]
    %v48 = vld [vmem:[#allocation2 + $0x14] sm:$0xf]
    %v49 = vld [vmem:[#allocation2 + $0x18] sm:$0xf]
    %v50 = vld [vmem:[#allocation2 + $0x1c] sm:$0xf]
    %v51 = vld [vmem:[#allocation2 + $0x20] sm:$0xf]
    %v52 = vld [vmem:[#allocation2 + $0x24] sm:$0xf]
    %v53 = vld [vmem:[#allocation2 + $0x28] sm:$0xf]
    %v54 = vld [vmem:[#allocation2 + $0x2c] sm:$0xf]
    %v55 = vld [vmem:[#allocation2 + $0x30] sm:$0xf]
    %v56 = vld [vmem:[#allocation2 + $0x34] sm:$0xf]
    %v57 = vld [vmem:[#allocation2 + $0x38] sm:$0xf]
    %v58 = vld [vmem:[#allocation2 + $0x3c] sm:$0xf]
    %v59 = vld [vmem:[#allocation4] sm:$0xf]
    %v60 = vld [vmem:[#allocation4 + $0x4] sm:$0xf]
    %v61 = vld [vmem:[#allocation4 + $0x8] sm:$0xf]
    %v62 = vld [vmem:[#allocation4 + $0xc] sm:$0xf]
    %v63 = vld [vmem:[#allocation4 + $0x10] sm:$0xf]
    %v64 = vld [vmem:[#allocation4 + $0x14] sm:$0xf]
    %v65 = vld [vmem:[#allocation4 + $0x18] sm:$0xf]
    %v66 = vld [vmem:[#allocation4 + $0x1c] sm:$0xf]
    %v67 = vld [vmem:[#allocation4 + $0x20] sm:$0xf]
    %v68 = vld [vmem:[#allocation4 + $0x24] sm:$0xf]
    %v69 = vld [vmem:[#allocation4 + $0x28] sm:$0xf]
    %v70 = vld [vmem:[#allocation4 + $0x2c] sm:$0xf]
    %v71 = vld [vmem:[#allocation4 + $0x30] sm:$0xf]
    %v72 = vld [vmem:[#allocation4 + $0x34] sm:$0xf]
    %v73 = vld [vmem:[#allocation4 + $0x38] sm:$0xf]
    %v74 = vld [vmem:[#allocation4 + $0x3c] sm:$0xf]
    %s75 = scalar_lea.vmem [#allocation4], 64
    %v76 = vld [vmem:[%s75] sm:$0xf]
    %v77 = vld [vmem:[%s75 + $0x4] sm:$0xf]
    %v78 = vld [vmem:[%s75 + $0x8] sm:$0xf]
    %v79 = vld [vmem:[%s75 + $0xc] sm:$0xf]
    %v80 = vld [vmem:[%s75 + $0x10] sm:$0xf]
    %v81 = vld [vmem:[%s75 + $0x14] sm:$0xf]
    %v82 = vld [vmem:[%s75 + $0x18] sm:$0xf]
    %v83 = vld [vmem:[%s75 + $0x1c] sm:$0xf]
    %v84 = vld [vmem:[%s75 + $0x20] sm:$0xf]
    %v85 = vld [vmem:[%s75 + $0x24] sm:$0xf]
    %v86 = vld [vmem:[%s75 + $0x28] sm:$0xf]
    %v87 = vld [vmem:[%s75 + $0x2c] sm:$0xf]
    %v88 = vld [vmem:[%s75 + $0x30] sm:$0xf]
    %v89 = vld [vmem:[%s75 + $0x34] sm:$0xf]
    %v90 = vld [vmem:[%s75 + $0x38] sm:$0xf]
    %v91 = vld [vmem:[%s75 + $0x3c] sm:$0xf]
    %v108 = vunpack.c.l.b16 %v43
    %v109 = vunpack.c.l.b16 %v44
    %v110 = vunpack.c.l.b16 %v45
    %v111 = vunpack.c.l.b16 %v46
    %v112 = vunpack.c.l.b16 %v47
    %v113 = vunpack.c.l.b16 %v48
    %v114 = vunpack.c.l.b16 %v49
    %v115 = vunpack.c.l.b16 %v50
    %v116 = vunpack.c.l.b16 %v51
    %v117 = vunpack.c.l.b16 %v52
    %v118 = vunpack.c.l.b16 %v53
    %v119 = vunpack.c.l.b16 %v54
    %v120 = vunpack.c.l.b16 %v55
    %v121 = vunpack.c.l.b16 %v56
    %v122 = vunpack.c.l.b16 %v57
    %v123 = vunpack.c.l.b16 %v58
    %v124 = vpack.c.b16 %v109, %v108
    %v125 = vpack.c.b16 %v111, %v110
    %v126 = vpack.c.b16 %v113, %v112
    %v127 = vpack.c.b16 %v115, %v114
    %v128 = vpack.c.b16 %v117, %v116
    %v129 = vpack.c.b16 %v119, %v118
    %v130 = vpack.c.b16 %v121, %v120
    %v131 = vpack.c.b16 %v123, %v122
    %v156 = vunpack.c.l.b16 %v76
    %v157 = vunpack.c.l.b16 %v77
    %v158 = vunpack.c.l.b16 %v78
    %v159 = vunpack.c.l.b16 %v79
    %v160 = vunpack.c.l.b16 %v80
    %v161 = vunpack.c.l.b16 %v81
    %v162 = vunpack.c.l.b16 %v82
    %v163 = vunpack.c.l.b16 %v83
    %v164 = vunpack.c.l.b16 %v84
    %v165 = vunpack.c.l.b16 %v85
    %v166 = vunpack.c.l.b16 %v86
    %v167 = vunpack.c.l.b16 %v87
    %v168 = vunpack.c.l.b16 %v88
    %v169 = vunpack.c.l.b16 %v89
    %v170 = vunpack.c.l.b16 %v90
    %v171 = vunpack.c.l.b16 %v91
    %v172 = vpack.c.b16 %v157, %v156
    %v173 = vpack.c.b16 %v159, %v158
    %v174 = vpack.c.b16 %v161, %v160
    %v175 = vpack.c.b16 %v163, %v162
    %v176 = vpack.c.b16 %v165, %v164
    %v177 = vpack.c.b16 %v167, %v166
    %v178 = vpack.c.b16 %v169, %v168
    %v179 = vpack.c.b16 %v171, %v170
    %188 = vmatprep.subr.bf16.mxu0 0
    %189 = vmatpush1.bf16.msra.mxu0 %v179
    %190 = vmatprep.subr.bf16.mxu0 0
    %191 = vmatpush1.bf16.msra.mxu0 %v178
    %192 = vmatprep.subr.bf16.mxu0 0
    %193 = vmatpush1.bf16.msra.mxu0 %v177
    %194 = vmatprep.subr.bf16.mxu0 0
    %195 = vmatpush1.bf16.msra.mxu0 %v176
    %196 = vmatprep.subr.bf16.mxu0 0
    %197 = vmatpush1.bf16.msra.mxu0 %v175
    %198 = vmatprep.subr.bf16.mxu0 0
    %199 = vmatpush1.bf16.msra.mxu0 %v174
    %200 = vmatprep.subr.bf16.mxu0 0
    %201 = vmatpush1.bf16.msra.mxu0 %v173
    %202 = vmatprep.subr.bf16.mxu0 0
    %203 = vmatpush1.bf16.msra.mxu0 %v172
    %204 = vmatprep.subr.bf16.mxu0 0
    %205 = vmatpush2.bf16.msra.mxu0 0
    %206 = vmatprep.subr.bf16.mxu0 0
    %207 = vmatpush2.bf16.msra.mxu0 0
    %208 = vmatprep.subr.bf16.mxu0 0
    %209 = vmatpush2.bf16.msra.mxu0 0
    %210 = vmatprep.subr.bf16.mxu0 0
    %211 = vmatpush2.bf16.msra.mxu0 0
    %212 = vmatprep.subr.bf16.mxu0 0
    %213 = vmatpush2.bf16.msra.mxu0 0
    %214 = vmatprep.subr.bf16.mxu0 0
    %215 = vmatpush2.bf16.msra.mxu0 0
    %216 = vmatprep.subr.bf16.mxu0 0
    %217 = vmatpush2.bf16.msra.mxu0 0
    %218 = vmatprep.subr.bf16.mxu0 0
    %219 = vmatpush2.bf16.msra.mxu0 0
    %220 = vmatprep.mubr.bf16.mxu0 0
    %221 = vmatmul.mubr.bf16.gmra.mxu0 %v124
    %v222 = vpop.f32.mrf.mxu0
    %v223 = vadd.f32 0.0, %v222
    %v224 = vpop.f32.mrf.mxu0
    %v225 = vpop.f32.mrf.mxu0
    %v226 = vadd.f32 0.0, %v225
    %v227 = vpop.f32.mrf.mxu0
    %228 = vmatprep.mubr.bf16.mxu0 0
    %229 = vmatmul.mubr.bf16.gmra.mxu0 %v125
    %v230 = vpop.f32.mrf.mxu0
    %v231 = vadd.f32 0.0, %v230
    %v232 = vpop.f32.mrf.mxu0
    %v233 = vpop.f32.mrf.mxu0
    %v234 = vadd.f32 0.0, %v233
    %v235 = vpop.f32.mrf.mxu0
    %236 = vmatprep.mubr.bf16.mxu0 0
    %237 = vmatmul.mubr.bf16.gmra.mxu0 %v126
    %v238 = vpop.f32.mrf.mxu0
    %v239 = vadd.f32 0.0, %v238
    %v240 = vpop.f32.mrf.mxu0
    %v241 = vpop.f32.mrf.mxu0
    %v242 = vadd.f32 0.0, %v241
    %v243 = vpop.f32.mrf.mxu0
    %244 = vmatprep.mubr.bf16.mxu0 0
    %245 = vmatmul.mubr.bf16.gmra.mxu0 %v127
    %v246 = vpop.f32.mrf.mxu0
    %v247 = vadd.f32 0.0, %v246
    %v248 = vpop.f32.mrf.mxu0
    %v249 = vpop.f32.mrf.mxu0
    %v250 = vadd.f32 0.0, %v249
    %v251 = vpop.f32.mrf.mxu0
    %252 = vmatprep.mubr.bf16.mxu0 0
    %253 = vmatmul.mubr.bf16.gmra.mxu0 %v128
    %v254 = vpop.f32.mrf.mxu0
    %v255 = vadd.f32 0.0, %v254
    %v256 = vpop.f32.mrf.mxu0
    %v257 = vpop.f32.mrf.mxu0
    %v258 = vadd.f32 0.0, %v257
    %v259 = vpop.f32.mrf.mxu0
    %260 = vmatprep.mubr.bf16.mxu0 0
    %261 = vmatmul.mubr.bf16.gmra.mxu0 %v129
    %v262 = vpop.f32.mrf.mxu0
    %v263 = vadd.f32 0.0, %v262
    %v264 = vpop.f32.mrf.mxu0
    %v265 = vpop.f32.mrf.mxu0
    %v266 = vadd.f32 0.0, %v265
    %v267 = vpop.f32.mrf.mxu0
    %268 = vmatprep.mubr.bf16.mxu0 0
    %269 = vmatmul.mubr.bf16.gmra.mxu0 %v130
    %v270 = vpop.f32.mrf.mxu0
    %v271 = vpop.f32.mrf.mxu0
    %v272 = vpop.f32.mrf.mxu0
    %v273 = vpop.f32.mrf.mxu0
    %274 = vmatprep.mubr.bf16.mxu0 0
    %275 = vmatmul.mubr.bf16.gmra.mxu0 %v131
    %v276 = vpop.f32.mrf.mxu0
    %v277 = vpop.f32.mrf.mxu0
    %v278 = vpop.f32.mrf.mxu0
    %v279 = vpop.f32.mrf.mxu0
    %280 = vdwg.mxu0
    %vm293 = vcmask 1046528
    %v294 = vrot.slane %v223, 1
    %v295 = vrot.slane %v226, 1
    %v296 = vsel %vm293, %v294, %v295
    %v297 = vrot.slane %v231, 1
    %v298 = vrot.slane %v234, 1
    %v299 = vsel %vm293, %v297, %v298
    %v300 = vrot.slane %v239, 1
    %v301 = vrot.slane %v242, 1
    %v302 = vsel %vm293, %v300, %v301
    %v303 = vrot.slane %v247, 1
    %v304 = vrot.slane %v250, 1
    %v305 = vsel %vm293, %v303, %v304
    %v306 = vrot.slane %v255, 1
    %v307 = vrot.slane %v258, 1
    %v308 = vsel %vm293, %v306, %v307
    %v309 = vrot.slane %v263, 1
    %v310 = vrot.slane %v266, 1
    %v311 = vsel %vm293, %v309, %v310
    %v334 = vunpack.c.l.b16 %v59
    %v335 = vunpack.c.l.b16 %v60
    %v336 = vunpack.c.l.b16 %v61
    %v337 = vunpack.c.l.b16 %v62
    %v338 = vunpack.c.l.b16 %v63
    %v339 = vunpack.c.l.b16 %v64
    %v340 = vunpack.c.l.b16 %v65
    %v341 = vunpack.c.l.b16 %v66
    %v342 = vunpack.c.l.b16 %v67
    %v343 = vunpack.c.l.b16 %v68
    %v344 = vunpack.c.l.b16 %v69
    %v345 = vunpack.c.l.b16 %v70
    %v346 = vunpack.c.l.b16 %v71
    %v347 = vunpack.c.l.b16 %v72
    %v348 = vunpack.c.l.b16 %v73
    %v349 = vunpack.c.l.b16 %v74
    %v350 = vpack.c.b16 %v335, %v334
    %v351 = vpack.c.b16 %v337, %v336
    %v352 = vpack.c.b16 %v339, %v338
    %v353 = vpack.c.b16 %v341, %v340
    %v354 = vpack.c.b16 %v343, %v342
    %v355 = vpack.c.b16 %v345, %v344
    %v356 = vpack.c.b16 %v347, %v346
    %v357 = vpack.c.b16 %v349, %v348
    %366 = vmatprep.subr.bf16.mxu0 0
    %367 = vmatpush1.bf16.msra.mxu0 %v357
    %368 = vmatprep.subr.bf16.mxu0 0
    %369 = vmatpush1.bf16.msra.mxu0 %v356
    %370 = vmatprep.subr.bf16.mxu0 0
    %371 = vmatpush1.bf16.msra.mxu0 %v355
    %372 = vmatprep.subr.bf16.mxu0 0
    %373 = vmatpush1.bf16.msra.mxu0 %v354
    %374 = vmatprep.subr.bf16.mxu0 0
    %375 = vmatpush1.bf16.msra.mxu0 %v353
    %376 = vmatprep.subr.bf16.mxu0 0
    %377 = vmatpush1.bf16.msra.mxu0 %v352
    %378 = vmatprep.subr.bf16.mxu0 0
    %379 = vmatpush1.bf16.msra.mxu0 %v351
    %380 = vmatprep.subr.bf16.mxu0 0
    %381 = vmatpush1.bf16.msra.mxu0 %v350
    %382 = vmatprep.subr.bf16.mxu0 0
    %383 = vmatpush2.bf16.msra.mxu0 0
    %384 = vmatprep.subr.bf16.mxu0 0
    %385 = vmatpush2.bf16.msra.mxu0 0
    %386 = vmatprep.subr.bf16.mxu0 0
    %387 = vmatpush2.bf16.msra.mxu0 0
    %388 = vmatprep.subr.bf16.mxu0 0
    %389 = vmatpush2.bf16.msra.mxu0 0
    %390 = vmatprep.subr.bf16.mxu0 0
    %391 = vmatpush2.bf16.msra.mxu0 0
    %392 = vmatprep.subr.bf16.mxu0 0
    %393 = vmatpush2.bf16.msra.mxu0 0
    %394 = vmatprep.subr.bf16.mxu0 0
    %395 = vmatpush2.bf16.msra.mxu0 0
    %396 = vmatprep.subr.bf16.mxu0 0
    %397 = vmatpush2.bf16.msra.mxu0 0
    %398 = vmatprep.mubr.bf16.mxu0 0
    %399 = vmatmul.mubr.bf16.gmra.mxu0 %v124
    %v400 = vpop.f32.mrf.mxu0
    %v401 = vadd.f32 %v296, %v400
    %v402 = vpop.f32.mrf.mxu0
    %v403 = vpop.f32.mrf.mxu0
    %v404 = vpop.f32.mrf.mxu0
    %405 = vmatprep.mubr.bf16.mxu0 0
    %406 = vmatmul.mubr.bf16.gmra.mxu0 %v125
    %v407 = vpop.f32.mrf.mxu0
    %v408 = vadd.f32 %v299, %v407
    %v409 = vpop.f32.mrf.mxu0
    %v410 = vpop.f32.mrf.mxu0
    %v411 = vpop.f32.mrf.mxu0
    %412 = vmatprep.mubr.bf16.mxu0 0
    %413 = vmatmul.mubr.bf16.gmra.mxu0 %v126
    %v414 = vpop.f32.mrf.mxu0
    %v415 = vadd.f32 %v302, %v414
    %v416 = vpop.f32.mrf.mxu0
    %v417 = vpop.f32.mrf.mxu0
    %v418 = vpop.f32.mrf.mxu0
    %419 = vmatprep.mubr.bf16.mxu0 0
    %420 = vmatmul.mubr.bf16.gmra.mxu0 %v127
    %v421 = vpop.f32.mrf.mxu0
    %v422 = vadd.f32 %v305, %v421
    %v423 = vpop.f32.mrf.mxu0
    %v424 = vpop.f32.mrf.mxu0
    %v425 = vpop.f32.mrf.mxu0
    %426 = vmatprep.mubr.bf16.mxu0 0
    %427 = vmatmul.mubr.bf16.gmra.mxu0 %v128
    %v428 = vpop.f32.mrf.mxu0
    %v429 = vadd.f32 %v308, %v428
    %v430 = vpop.f32.mrf.mxu0
    %v431 = vpop.f32.mrf.mxu0
    %v432 = vpop.f32.mrf.mxu0
    %433 = vmatprep.mubr.bf16.mxu0 0
    %434 = vmatmul.mubr.bf16.gmra.mxu0 %v129
    %v435 = vpop.f32.mrf.mxu0
    %v436 = vadd.f32 %v311, %v435
    %v437 = vpop.f32.mrf.mxu0
    %v438 = vpop.f32.mrf.mxu0
    %v439 = vpop.f32.mrf.mxu0
    %440 = vmatprep.mubr.bf16.mxu0 0
    %441 = vmatmul.mubr.bf16.gmra.mxu0 %v130
    %v442 = vpop.f32.mrf.mxu0
    %v443 = vpop.f32.mrf.mxu0
    %v444 = vpop.f32.mrf.mxu0
    %v445 = vpop.f32.mrf.mxu0
    %446 = vmatprep.mubr.bf16.mxu0 0
    %447 = vmatmul.mubr.bf16.gmra.mxu0 %v131
    %v448 = vpop.f32.mrf.mxu0
    %v449 = vpop.f32.mrf.mxu0
    %v450 = vpop.f32.mrf.mxu0
    %v451 = vpop.f32.mrf.mxu0
    %452 = vdwg.mxu0
    %s453 = scalar_lea.vmem [#allocation4], 128
    %v454 = vld [vmem:[%s453] sm:$0xf]
    %v455 = vld [vmem:[%s453 + $0x4] sm:$0xf]
    %v456 = vld [vmem:[%s453 + $0x8] sm:$0xf]
    %v457 = vld [vmem:[%s453 + $0xc] sm:$0xf]
    %v458 = vld [vmem:[%s453 + $0x10] sm:$0xf]
    %v459 = vld [vmem:[%s453 + $0x14] sm:$0xf]
    %v460 = vld [vmem:[%s453 + $0x18] sm:$0xf]
    %v461 = vld [vmem:[%s453 + $0x1c] sm:$0xf]
    %v462 = vld [vmem:[%s453 + $0x20] sm:$0xf]
    %v463 = vld [vmem:[%s453 + $0x24] sm:$0xf]
    %v464 = vld [vmem:[%s453 + $0x28] sm:$0xf]
    %v465 = vld [vmem:[%s453 + $0x2c] sm:$0xf]
    %v466 = vld [vmem:[%s453 + $0x30] sm:$0xf]
    %v467 = vld [vmem:[%s453 + $0x34] sm:$0xf]
    %v468 = vld [vmem:[%s453 + $0x38] sm:$0xf]
    %v469 = vld [vmem:[%s453 + $0x3c] sm:$0xf]
    %v486 = vunpack.c.l.b16 %v454
    %v487 = vunpack.c.l.b16 %v455
    %v488 = vunpack.c.l.b16 %v456
    %v489 = vunpack.c.l.b16 %v457
    %v490 = vunpack.c.l.b16 %v458
    %v491 = vunpack.c.l.b16 %v459
    %v492 = vunpack.c.l.b16 %v460
    %v493 = vunpack.c.l.b16 %v461
    %v494 = vunpack.c.l.b16 %v462
    %v495 = vunpack.c.l.b16 %v463
    %v496 = vunpack.c.l.b16 %v464
    %v497 = vunpack.c.l.b16 %v465
    %v498 = vunpack.c.l.b16 %v466
    %v499 = vunpack.c.l.b16 %v467
    %v500 = vunpack.c.l.b16 %v468
    %v501 = vunpack.c.l.b16 %v469
    %v502 = vpack.c.b16 %v487, %v486
    %v503 = vpack.c.b16 %v489, %v488
    %v504 = vpack.c.b16 %v491, %v490
    %v505 = vpack.c.b16 %v493, %v492
    %v506 = vpack.c.b16 %v495, %v494
    %v507 = vpack.c.b16 %v497, %v496
    %v508 = vpack.c.b16 %v499, %v498
    %v509 = vpack.c.b16 %v501, %v500
    %518 = vmatprep.subr.bf16.mxu0 0
    %519 = vmatpush1.bf16.msra.mxu0 %v509
    %520 = vmatprep.subr.bf16.mxu0 0
    %521 = vmatpush1.bf16.msra.mxu0 %v508
    %522 = vmatprep.subr.bf16.mxu0 0
    %523 = vmatpush1.bf16.msra.mxu0 %v507
    %524 = vmatprep.subr.bf16.mxu0 0
    %525 = vmatpush1.bf16.msra.mxu0 %v506
    %526 = vmatprep.subr.bf16.mxu0 0
    %527 = vmatpush1.bf16.msra.mxu0 %v505
    %528 = vmatprep.subr.bf16.mxu0 0
    %529 = vmatpush1.bf16.msra.mxu0 %v504
    %530 = vmatprep.subr.bf16.mxu0 0
    %531 = vmatpush1.bf16.msra.mxu0 %v503
    %532 = vmatprep.subr.bf16.mxu0 0
    %533 = vmatpush1.bf16.msra.mxu0 %v502
    %534 = vmatprep.subr.bf16.mxu0 0
    %535 = vmatpush2.bf16.msra.mxu0 0
    %536 = vmatprep.subr.bf16.mxu0 0
    %537 = vmatpush2.bf16.msra.mxu0 0
    %538 = vmatprep.subr.bf16.mxu0 0
    %539 = vmatpush2.bf16.msra.mxu0 0
    %540 = vmatprep.subr.bf16.mxu0 0
    %541 = vmatpush2.bf16.msra.mxu0 0
    %542 = vmatprep.subr.bf16.mxu0 0
    %543 = vmatpush2.bf16.msra.mxu0 0
    %544 = vmatprep.subr.bf16.mxu0 0
    %545 = vmatpush2.bf16.msra.mxu0 0
    %546 = vmatprep.subr.bf16.mxu0 0
    %547 = vmatpush2.bf16.msra.mxu0 0
    %548 = vmatprep.subr.bf16.mxu0 0
    %549 = vmatpush2.bf16.msra.mxu0 0
    %550 = vmatprep.mubr.bf16.mxu0 0
    %551 = vmatmul.mubr.bf16.gmra.mxu0 %v124
    %v552 = vpop.f32.mrf.mxu0
    %v553 = vadd.f32 0.0, %v552
    %v554 = vpop.f32.mrf.mxu0
    %v555 = vpop.f32.mrf.mxu0
    %v556 = vadd.f32 0.0, %v555
    %v557 = vpop.f32.mrf.mxu0
    %558 = vmatprep.mubr.bf16.mxu0 0
    %559 = vmatmul.mubr.bf16.gmra.mxu0 %v125
    %v560 = vpop.f32.mrf.mxu0
    %v561 = vadd.f32 0.0, %v560
    %v562 = vpop.f32.mrf.mxu0
    %v563 = vpop.f32.mrf.mxu0
    %v564 = vadd.f32 0.0, %v563
    %v565 = vpop.f32.mrf.mxu0
    %566 = vmatprep.mubr.bf16.mxu0 0
    %567 = vmatmul.mubr.bf16.gmra.mxu0 %v126
    %v568 = vpop.f32.mrf.mxu0
    %v569 = vadd.f32 0.0, %v568
    %v570 = vpop.f32.mrf.mxu0
    %v571 = vpop.f32.mrf.mxu0
    %v572 = vadd.f32 0.0, %v571
    %v573 = vpop.f32.mrf.mxu0
    %574 = vmatprep.mubr.bf16.mxu0 0
    %575 = vmatmul.mubr.bf16.gmra.mxu0 %v127
    %v576 = vpop.f32.mrf.mxu0
    %v577 = vadd.f32 0.0, %v576
    %v578 = vpop.f32.mrf.mxu0
    %v579 = vpop.f32.mrf.mxu0
    %v580 = vadd.f32 0.0, %v579
    %v581 = vpop.f32.mrf.mxu0
    %582 = vmatprep.mubr.bf16.mxu0 0
    %583 = vmatmul.mubr.bf16.gmra.mxu0 %v128
    %v584 = vpop.f32.mrf.mxu0
    %v585 = vadd.f32 0.0, %v584
    %v586 = vpop.f32.mrf.mxu0
    %v587 = vpop.f32.mrf.mxu0
    %v588 = vadd.f32 0.0, %v587
    %v589 = vpop.f32.mrf.mxu0
    %590 = vmatprep.mubr.bf16.mxu0 0
    %591 = vmatmul.mubr.bf16.gmra.mxu0 %v129
    %v592 = vpop.f32.mrf.mxu0
    %v593 = vadd.f32 0.0, %v592
    %v594 = vpop.f32.mrf.mxu0
    %v595 = vpop.f32.mrf.mxu0
    %v596 = vadd.f32 0.0, %v595
    %v597 = vpop.f32.mrf.mxu0
    %598 = vmatprep.mubr.bf16.mxu0 0
    %599 = vmatmul.mubr.bf16.gmra.mxu0 %v130
    %v600 = vpop.f32.mrf.mxu0
    %v601 = vpop.f32.mrf.mxu0
    %v602 = vpop.f32.mrf.mxu0
    %v603 = vpop.f32.mrf.mxu0
    %604 = vmatprep.mubr.bf16.mxu0 0
    %605 = vmatmul.mubr.bf16.gmra.mxu0 %v131
    %v606 = vpop.f32.mrf.mxu0
    %v607 = vpop.f32.mrf.mxu0
    %v608 = vpop.f32.mrf.mxu0
    %v609 = vpop.f32.mrf.mxu0
    %610 = vdwg.mxu0
    %vm623 = vcmask 1045504
    %v624 = vrot.slane %v553, 2
    %v625 = vrot.slane %v556, 2
    %v626 = vsel %vm623, %v624, %v625
    %v627 = vrot.slane %v561, 2
    %v628 = vrot.slane %v564, 2
    %v629 = vsel %vm623, %v627, %v628
    %v630 = vrot.slane %v569, 2
    %v631 = vrot.slane %v572, 2
    %v632 = vsel %vm623, %v630, %v631
    %v633 = vrot.slane %v577, 2
    %v634 = vrot.slane %v580, 2
    %v635 = vsel %vm623, %v633, %v634
    %v636 = vrot.slane %v585, 2
    %v637 = vrot.slane %v588, 2
    %v638 = vsel %vm623, %v636, %v637
    %v639 = vrot.slane %v593, 2
    %v640 = vrot.slane %v596, 2
    %v641 = vsel %vm623, %v639, %v640
    %v648 = vadd.f32 %v401, %v626
    %v649 = vadd.f32 %v408, %v629
    %v650 = vadd.f32 %v415, %v632
    %v651 = vadd.f32 %v422, %v635
    %v652 = vadd.f32 %v429, %v638
    %v653 = vadd.f32 %v436, %v641
    %s654 = scalar_lea.vmem [#allocation4], 192
    %v655 = vld [vmem:[%s654] sm:$0xf]
    %v656 = vld [vmem:[%s654 + $0x4] sm:$0xf]
    %v657 = vld [vmem:[%s654 + $0x8] sm:$0xf]
    %v658 = vld [vmem:[%s654 + $0xc] sm:$0xf]
    %v659 = vld [vmem:[%s654 + $0x10] sm:$0xf]
    %v660 = vld [vmem:[%s654 + $0x14] sm:$0xf]
    %v661 = vld [vmem:[%s654 + $0x18] sm:$0xf]
    %v662 = vld [vmem:[%s654 + $0x1c] sm:$0xf]
    %v663 = vld [vmem:[%s654 + $0x20] sm:$0xf]
    %v664 = vld [vmem:[%s654 + $0x24] sm:$0xf]
    %v665 = vld [vmem:[%s654 + $0x28] sm:$0xf]
    %v666 = vld [vmem:[%s654 + $0x2c] sm:$0xf]
    %v667 = vld [vmem:[%s654 + $0x30] sm:$0xf]
    %v668 = vld [vmem:[%s654 + $0x34] sm:$0xf]
    %v669 = vld [vmem:[%s654 + $0x38] sm:$0xf]
    %v670 = vld [vmem:[%s654 + $0x3c] sm:$0xf]
    %v687 = vunpack.c.l.b16 %v655
    %v688 = vunpack.c.l.b16 %v656
    %v689 = vunpack.c.l.b16 %v657
    %v690 = vunpack.c.l.b16 %v658
    %v691 = vunpack.c.l.b16 %v659
    %v692 = vunpack.c.l.b16 %v660
    %v693 = vunpack.c.l.b16 %v661
    %v694 = vunpack.c.l.b16 %v662
    %v695 = vunpack.c.l.b16 %v663
    %v696 = vunpack.c.l.b16 %v664
    %v697 = vunpack.c.l.b16 %v665
    %v698 = vunpack.c.l.b16 %v666
    %v699 = vunpack.c.l.b16 %v667
    %v700 = vunpack.c.l.b16 %v668
    %v701 = vunpack.c.l.b16 %v669
    %v702 = vunpack.c.l.b16 %v670
    %v703 = vpack.c.b16 %v688, %v687
    %v704 = vpack.c.b16 %v690, %v689
    %v705 = vpack.c.b16 %v692, %v691
    %v706 = vpack.c.b16 %v694, %v693
    %v707 = vpack.c.b16 %v696, %v695
    %v708 = vpack.c.b16 %v698, %v697
    %v709 = vpack.c.b16 %v700, %v699
    %v710 = vpack.c.b16 %v702, %v701
    %719 = vmatprep.subr.bf16.mxu0 0
    %720 = vmatpush1.bf16.msra.mxu0 %v710
    %721 = vmatprep.subr.bf16.mxu0 0
    %722 = vmatpush1.bf16.msra.mxu0 %v709
    %723 = vmatprep.subr.bf16.mxu0 0
    %724 = vmatpush1.bf16.msra.mxu0 %v708
    %725 = vmatprep.subr.bf16.mxu0 0
    %726 = vmatpush1.bf16.msra.mxu0 %v707
    %727 = vmatprep.subr.bf16.mxu0 0
    %728 = vmatpush1.bf16.msra.mxu0 %v706
    %729 = vmatprep.subr.bf16.mxu0 0
    %730 = vmatpush1.bf16.msra.mxu0 %v705
    %731 = vmatprep.subr.bf16.mxu0 0
    %732 = vmatpush1.bf16.msra.mxu0 %v704
    %733 = vmatprep.subr.bf16.mxu0 0
    %734 = vmatpush1.bf16.msra.mxu0 %v703
    %735 = vmatprep.subr.bf16.mxu0 0
    %736 = vmatpush2.bf16.msra.mxu0 0
    %737 = vmatprep.subr.bf16.mxu0 0
    %738 = vmatpush2.bf16.msra.mxu0 0
    %739 = vmatprep.subr.bf16.mxu0 0
    %740 = vmatpush2.bf16.msra.mxu0 0
    %741 = vmatprep.subr.bf16.mxu0 0
    %742 = vmatpush2.bf16.msra.mxu0 0
    %743 = vmatprep.subr.bf16.mxu0 0
    %744 = vmatpush2.bf16.msra.mxu0 0
    %745 = vmatprep.subr.bf16.mxu0 0
    %746 = vmatpush2.bf16.msra.mxu0 0
    %747 = vmatprep.subr.bf16.mxu0 0
    %748 = vmatpush2.bf16.msra.mxu0 0
    %749 = vmatprep.subr.bf16.mxu0 0
    %750 = vmatpush2.bf16.msra.mxu0 0
    %751 = vmatprep.mubr.bf16.mxu0 0
    %752 = vmatmul.mubr.bf16.gmra.mxu0 %v124
    %v753 = vpop.f32.mrf.mxu0
    %v754 = vpop.f32.mrf.mxu0
    %v755 = vpop.f32.mrf.mxu0
    %v756 = vpop.f32.mrf.mxu0
    %757 = vmatprep.mubr.bf16.mxu0 0
    %758 = vmatmul.mubr.bf16.gmra.mxu0 %v125
    %v759 = vpop.f32.mrf.mxu0
    %v760 = vadd.f32 0.0, %v759
    %v761 = vpop.f32.mrf.mxu0
    %v762 = vpop.f32.mrf.mxu0
    %v763 = vpop.f32.mrf.mxu0
    %764 = vmatprep.mubr.bf16.mxu0 0
    %765 = vmatmul.mubr.bf16.gmra.mxu0 %v126
    %v766 = vpop.f32.mrf.mxu0
    %v767 = vadd.f32 0.0, %v766
    %v768 = vpop.f32.mrf.mxu0
    %v769 = vpop.f32.mrf.mxu0
    %v770 = vpop.f32.mrf.mxu0
    %771 = vmatprep.mubr.bf16.mxu0 0
    %772 = vmatmul.mubr.bf16.gmra.mxu0 %v127
    %v773 = vpop.f32.mrf.mxu0
    %v774 = vadd.f32 0.0, %v773
    %v775 = vpop.f32.mrf.mxu0
    %v776 = vpop.f32.mrf.mxu0
    %v777 = vpop.f32.mrf.mxu0
    %778 = vmatprep.mubr.bf16.mxu0 0
    %779 = vmatmul.mubr.bf16.gmra.mxu0 %v128
    %v780 = vpop.f32.mrf.mxu0
    %v781 = vadd.f32 0.0, %v780
    %v782 = vpop.f32.mrf.mxu0
    %v783 = vpop.f32.mrf.mxu0
    %v784 = vpop.f32.mrf.mxu0
    %785 = vmatprep.mubr.bf16.mxu0 0
    %786 = vmatmul.mubr.bf16.gmra.mxu0 %v129
    %v787 = vpop.f32.mrf.mxu0
    %v788 = vadd.f32 0.0, %v787
    %v789 = vpop.f32.mrf.mxu0
    %v790 = vpop.f32.mrf.mxu0
    %v791 = vpop.f32.mrf.mxu0
    %792 = vmatprep.mubr.bf16.mxu0 0
    %793 = vmatmul.mubr.bf16.gmra.mxu0 %v130
    %v794 = vpop.f32.mrf.mxu0
    %v795 = vadd.f32 0.0, %v794
    %v796 = vpop.f32.mrf.mxu0
    %v797 = vpop.f32.mrf.mxu0
    %v798 = vpop.f32.mrf.mxu0
    %799 = vmatprep.mubr.bf16.mxu0 0
    %800 = vmatmul.mubr.bf16.gmra.mxu0 %v131
    %v801 = vpop.f32.mrf.mxu0
    %v802 = vpop.f32.mrf.mxu0
    %v803 = vpop.f32.mrf.mxu0
    %v804 = vpop.f32.mrf.mxu0
    %805 = vdwg.mxu0
    %v806 = vadd.f32 %v648, %v760
    %v807 = vadd.f32 %v649, %v767
    %v808 = vadd.f32 %v650, %v774
    %v809 = vadd.f32 %v651, %v781
    %v810 = vadd.f32 %v652, %v788
    %v811 = vadd.f32 %v653, %v795
    %s812 = scalar_lea.vmem [#allocation4], 256
    %v813 = vld [vmem:[%s812] sm:$0xf]
    %v814 = vld [vmem:[%s812 + $0x4] sm:$0xf]
    %v815 = vld [vmem:[%s812 + $0x8] sm:$0xf]
    %v816 = vld [vmem:[%s812 + $0xc] sm:$0xf]
    %v817 = vld [vmem:[%s812 + $0x10] sm:$0xf]
    %v818 = vld [vmem:[%s812 + $0x14] sm:$0xf]
    %v819 = vld [vmem:[%s812 + $0x18] sm:$0xf]
    %v820 = vld [vmem:[%s812 + $0x1c] sm:$0xf]
    %v821 = vld [vmem:[%s812 + $0x20] sm:$0xf]
    %v822 = vld [vmem:[%s812 + $0x24] sm:$0xf]
    %v823 = vld [vmem:[%s812 + $0x28] sm:$0xf]
    %v824 = vld [vmem:[%s812 + $0x2c] sm:$0xf]
    %v825 = vld [vmem:[%s812 + $0x30] sm:$0xf]
    %v826 = vld [vmem:[%s812 + $0x34] sm:$0xf]
    %v827 = vld [vmem:[%s812 + $0x38] sm:$0xf]
    %v828 = vld [vmem:[%s812 + $0x3c] sm:$0xf]
    %v845 = vunpack.c.l.b16 %v813
    %v846 = vunpack.c.l.b16 %v814
    %v847 = vunpack.c.l.b16 %v815
    %v848 = vunpack.c.l.b16 %v816
    %v849 = vunpack.c.l.b16 %v817
    %v850 = vunpack.c.l.b16 %v818
    %v851 = vunpack.c.l.b16 %v819
    %v852 = vunpack.c.l.b16 %v820
    %v853 = vunpack.c.l.b16 %v821
    %v854 = vunpack.c.l.b16 %v822
    %v855 = vunpack.c.l.b16 %v823
    %v856 = vunpack.c.l.b16 %v824
    %v857 = vunpack.c.l.b16 %v825
    %v858 = vunpack.c.l.b16 %v826
    %v859 = vunpack.c.l.b16 %v827
    %v860 = vunpack.c.l.b16 %v828
    %v861 = vpack.c.b16 %v846, %v845
    %v862 = vpack.c.b16 %v848, %v847
    %v863 = vpack.c.b16 %v850, %v849
    %v864 = vpack.c.b16 %v852, %v851
    %v865 = vpack.c.b16 %v854, %v853
    %v866 = vpack.c.b16 %v856, %v855
    %v867 = vpack.c.b16 %v858, %v857
    %v868 = vpack.c.b16 %v860, %v859
    %877 = vmatprep.subr.bf16.mxu0 0
    %878 = vmatpush1.bf16.msra.mxu0 %v868
    %879 = vmatprep.subr.bf16.mxu0 0
    %880 = vmatpush1.bf16.msra.mxu0 %v867
    %881 = vmatprep.subr.bf16.mxu0 0
    %882 = vmatpush1.bf16.msra.mxu0 %v866
    %883 = vmatprep.subr.bf16.mxu0 0
    %884 = vmatpush1.bf16.msra.mxu0 %v865
    %885 = vmatprep.subr.bf16.mxu0 0
    %886 = vmatpush1.bf16.msra.mxu0 %v864
    %887 = vmatprep.subr.bf16.mxu0 0
    %888 = vmatpush1.bf16.msra.mxu0 %v863
    %889 = vmatprep.subr.bf16.mxu0 0
    %890 = vmatpush1.bf16.msra.mxu0 %v862
    %891 = vmatprep.subr.bf16.mxu0 0
    %892 = vmatpush1.bf16.msra.mxu0 %v861
    %893 = vmatprep.subr.bf16.mxu0 0
    %894 = vmatpush2.bf16.msra.mxu0 0
    %895 = vmatprep.subr.bf16.mxu0 0
    %896 = vmatpush2.bf16.msra.mxu0 0
    %897 = vmatprep.subr.bf16.mxu0 0
    %898 = vmatpush2.bf16.msra.mxu0 0
    %899 = vmatprep.subr.bf16.mxu0 0
    %900 = vmatpush2.bf16.msra.mxu0 0
    %901 = vmatprep.subr.bf16.mxu0 0
    %902 = vmatpush2.bf16.msra.mxu0 0
    %903 = vmatprep.subr.bf16.mxu0 0
    %904 = vmatpush2.bf16.msra.mxu0 0
    %905 = vmatprep.subr.bf16.mxu0 0
    %906 = vmatpush2.bf16.msra.mxu0 0
    %907 = vmatprep.subr.bf16.mxu0 0
    %908 = vmatpush2.bf16.msra.mxu0 0
    %909 = vmatprep.mubr.bf16.mxu0 0
    %910 = vmatmul.mubr.bf16.gmra.mxu0 %v124
    %v911 = vpop.f32.mrf.mxu0
    %v912 = vpop.f32.mrf.mxu0
    %v913 = vpop.f32.mrf.mxu0
    %v914 = vpop.f32.mrf.mxu0
    %915 = vmatprep.mubr.bf16.mxu0 0
    %916 = vmatmul.mubr.bf16.gmra.mxu0 %v125
    %v917 = vpop.f32.mrf.mxu0
    %v918 = vadd.f32 0.0, %v917
    %v919 = vpop.f32.mrf.mxu0
    %v920 = vpop.f32.mrf.mxu0
    %v921 = vadd.f32 0.0, %v920
    %v922 = vpop.f32.mrf.mxu0
    %923 = vmatprep.mubr.bf16.mxu0 0
    %924 = vmatmul.mubr.bf16.gmra.mxu0 %v126
    %v925 = vpop.f32.mrf.mxu0
    %v926 = vadd.f32 0.0, %v925
    %v927 = vpop.f32.mrf.mxu0
    %v928 = vpop.f32.mrf.mxu0
    %v929 = vadd.f32 0.0, %v928
    %v930 = vpop.f32.mrf.mxu0
    %931 = vmatprep.mubr.bf16.mxu0 0
    %932 = vmatmul.mubr.bf16.gmra.mxu0 %v127
    %v933 = vpop.f32.mrf.mxu0
    %v934 = vadd.f32 0.0, %v933
    %v935 = vpop.f32.mrf.mxu0
    %v936 = vpop.f32.mrf.mxu0
    %v937 = vadd.f32 0.0, %v936
    %v938 = vpop.f32.mrf.mxu0
    %939 = vmatprep.mubr.bf16.mxu0 0
    %940 = vmatmul.mubr.bf16.gmra.mxu0 %v128
    %v941 = vpop.f32.mrf.mxu0
    %v942 = vadd.f32 0.0, %v941
    %v943 = vpop.f32.mrf.mxu0
    %v944 = vpop.f32.mrf.mxu0
    %v945 = vadd.f32 0.0, %v944
    %v946 = vpop.f32.mrf.mxu0
    %947 = vmatprep.mubr.bf16.mxu0 0
    %948 = vmatmul.mubr.bf16.gmra.mxu0 %v129
    %v949 = vpop.f32.mrf.mxu0
    %v950 = vadd.f32 0.0, %v949
    %v951 = vpop.f32.mrf.mxu0
    %v952 = vpop.f32.mrf.mxu0
    %v953 = vadd.f32 0.0, %v952
    %v954 = vpop.f32.mrf.mxu0
    %955 = vmatprep.mubr.bf16.mxu0 0
    %956 = vmatmul.mubr.bf16.gmra.mxu0 %v130
    %v957 = vpop.f32.mrf.mxu0
    %v958 = vadd.f32 0.0, %v957
    %v959 = vpop.f32.mrf.mxu0
    %v960 = vpop.f32.mrf.mxu0
    %v961 = vadd.f32 0.0, %v960
    %v962 = vpop.f32.mrf.mxu0
    %963 = vmatprep.mubr.bf16.mxu0 0
    %964 = vmatmul.mubr.bf16.gmra.mxu0 %v131
    %v965 = vpop.f32.mrf.mxu0
    %v966 = vpop.f32.mrf.mxu0
    %v967 = vpop.f32.mrf.mxu0
    %v968 = vpop.f32.mrf.mxu0
    %969 = vdwg.mxu0
    %v982 = vrot.slane %v918, 1
    %v983 = vrot.slane %v921, 1
    %v984 = vsel %vm293, %v982, %v983
    %v985 = vrot.slane %v926, 1
    %v986 = vrot.slane %v929, 1
    %v987 = vsel %vm293, %v985, %v986
    %v988 = vrot.slane %v934, 1
    %v989 = vrot.slane %v937, 1
    %v990 = vsel %vm293, %v988, %v989
    %v991 = vrot.slane %v942, 1
    %v992 = vrot.slane %v945, 1
    %v993 = vsel %vm293, %v991, %v992
    %v994 = vrot.slane %v950, 1
    %v995 = vrot.slane %v953, 1
    %v996 = vsel %vm293, %v994, %v995
    %v997 = vrot.slane %v958, 1
    %v998 = vrot.slane %v961, 1
    %v999 = vsel %vm293, %v997, %v998
    %v1006 = vadd.f32 %v806, %v984
    %v1007 = vadd.f32 %v807, %v987
    %v1008 = vadd.f32 %v808, %v990
    %v1009 = vadd.f32 %v809, %v993
    %v1010 = vadd.f32 %v810, %v996
    %v1011 = vadd.f32 %v811, %v999
    %s1012 = scalar_lea.vmem [#allocation4], 320
    %v1013 = vld [vmem:[%s1012] sm:$0xf]
    %v1014 = vld [vmem:[%s1012 + $0x4] sm:$0xf]
    %v1015 = vld [vmem:[%s1012 + $0x8] sm:$0xf]
    %v1016 = vld [vmem:[%s1012 + $0xc] sm:$0xf]
    %v1017 = vld [vmem:[%s1012 + $0x10] sm:$0xf]
    %v1018 = vld [vmem:[%s1012 + $0x14] sm:$0xf]
    %v1019 = vld [vmem:[%s1012 + $0x18] sm:$0xf]
    %v1020 = vld [vmem:[%s1012 + $0x1c] sm:$0xf]
    %v1021 = vld [vmem:[%s1012 + $0x20] sm:$0xf]
    %v1022 = vld [vmem:[%s1012 + $0x24] sm:$0xf]
    %v1023 = vld [vmem:[%s1012 + $0x28] sm:$0xf]
    %v1024 = vld [vmem:[%s1012 + $0x2c] sm:$0xf]
    %v1025 = vld [vmem:[%s1012 + $0x30] sm:$0xf]
    %v1026 = vld [vmem:[%s1012 + $0x34] sm:$0xf]
    %v1027 = vld [vmem:[%s1012 + $0x38] sm:$0xf]
    %v1028 = vld [vmem:[%s1012 + $0x3c] sm:$0xf]
    %v1045 = vunpack.c.l.b16 %v1013
    %v1046 = vunpack.c.l.b16 %v1014
    %v1047 = vunpack.c.l.b16 %v1015
    %v1048 = vunpack.c.l.b16 %v1016
    %v1049 = vunpack.c.l.b16 %v1017
    %v1050 = vunpack.c.l.b16 %v1018
    %v1051 = vunpack.c.l.b16 %v1019
    %v1052 = vunpack.c.l.b16 %v1020
    %v1053 = vunpack.c.l.b16 %v1021
    %v1054 = vunpack.c.l.b16 %v1022
    %v1055 = vunpack.c.l.b16 %v1023
    %v1056 = vunpack.c.l.b16 %v1024
    %v1057 = vunpack.c.l.b16 %v1025
    %v1058 = vunpack.c.l.b16 %v1026
    %v1059 = vunpack.c.l.b16 %v1027
    %v1060 = vunpack.c.l.b16 %v1028
    %v1061 = vpack.c.b16 %v1046, %v1045
    %v1062 = vpack.c.b16 %v1048, %v1047
    %v1063 = vpack.c.b16 %v1050, %v1049
    %v1064 = vpack.c.b16 %v1052, %v1051
    %v1065 = vpack.c.b16 %v1054, %v1053
    %v1066 = vpack.c.b16 %v1056, %v1055
    %v1067 = vpack.c.b16 %v1058, %v1057
    %v1068 = vpack.c.b16 %v1060, %v1059
    %1077 = vmatprep.subr.bf16.mxu0 0
    %1078 = vmatpush1.bf16.msra.mxu0 %v1068
    %1079 = vmatprep.subr.bf16.mxu0 0
    %1080 = vmatpush1.bf16.msra.mxu0 %v1067
    %1081 = vmatprep.subr.bf16.mxu0 0
    %1082 = vmatpush1.bf16.msra.mxu0 %v1066
    %1083 = vmatprep.subr.bf16.mxu0 0
    %1084 = vmatpush1.bf16.msra.mxu0 %v1065
    %1085 = vmatprep.subr.bf16.mxu0 0
    %1086 = vmatpush1.bf16.msra.mxu0 %v1064
    %1087 = vmatprep.subr.bf16.mxu0 0
    %1088 = vmatpush1.bf16.msra.mxu0 %v1063
    %1089 = vmatprep.subr.bf16.mxu0 0
    %1090 = vmatpush1.bf16.msra.mxu0 %v1062
    %1091 = vmatprep.subr.bf16.mxu0 0
    %1092 = vmatpush1.bf16.msra.mxu0 %v1061
    %1093 = vmatprep.subr.bf16.mxu0 0
    %1094 = vmatpush2.bf16.msra.mxu0 0
    %1095 = vmatprep.subr.bf16.mxu0 0
    %1096 = vmatpush2.bf16.msra.mxu0 0
    %1097 = vmatprep.subr.bf16.mxu0 0
    %1098 = vmatpush2.bf16.msra.mxu0 0
    %1099 = vmatprep.subr.bf16.mxu0 0
    %1100 = vmatpush2.bf16.msra.mxu0 0
    %1101 = vmatprep.subr.bf16.mxu0 0
    %1102 = vmatpush2.bf16.msra.mxu0 0
    %1103 = vmatprep.subr.bf16.mxu0 0
    %1104 = vmatpush2.bf16.msra.mxu0 0
    %1105 = vmatprep.subr.bf16.mxu0 0
    %1106 = vmatpush2.bf16.msra.mxu0 0
    %1107 = vmatprep.subr.bf16.mxu0 0
    %1108 = vmatpush2.bf16.msra.mxu0 0
    %1109 = vmatprep.mubr.bf16.mxu0 0
    %1110 = vmatmul.mubr.bf16.gmra.mxu0 %v124
    %v1111 = vpop.f32.mrf.mxu0
    %v1112 = vpop.f32.mrf.mxu0
    %v1113 = vpop.f32.mrf.mxu0
    %v1114 = vpop.f32.mrf.mxu0
    %1115 = vmatprep.mubr.bf16.mxu0 0
    %1116 = vmatmul.mubr.bf16.gmra.mxu0 %v125
    %v1117 = vpop.f32.mrf.mxu0
    %v1118 = vadd.f32 0.0, %v1117
    %v1119 = vpop.f32.mrf.mxu0
    %v1120 = vpop.f32.mrf.mxu0
    %v1121 = vadd.f32 0.0, %v1120
    %v1122 = vpop.f32.mrf.mxu0
    %1123 = vmatprep.mubr.bf16.mxu0 0
    %1124 = vmatmul.mubr.bf16.gmra.mxu0 %v126
    %v1125 = vpop.f32.mrf.mxu0
    %v1126 = vadd.f32 0.0, %v1125
    %v1127 = vpop.f32.mrf.mxu0
    %v1128 = vpop.f32.mrf.mxu0
    %v1129 = vadd.f32 0.0, %v1128
    %v1130 = vpop.f32.mrf.mxu0
    %1131 = vmatprep.mubr.bf16.mxu0 0
    %1132 = vmatmul.mubr.bf16.gmra.mxu0 %v127
    %v1133 = vpop.f32.mrf.mxu0
    %v1134 = vadd.f32 0.0, %v1133
    %v1135 = vpop.f32.mrf.mxu0
    %v1136 = vpop.f32.mrf.mxu0
    %v1137 = vadd.f32 0.0, %v1136
    %v1138 = vpop.f32.mrf.mxu0
    %1139 = vmatprep.mubr.bf16.mxu0 0
    %1140 = vmatmul.mubr.bf16.gmra.mxu0 %v128
    %v1141 = vpop.f32.mrf.mxu0
    %v1142 = vadd.f32 0.0, %v1141
    %v1143 = vpop.f32.mrf.mxu0
    %v1144 = vpop.f32.mrf.mxu0
    %v1145 = vadd.f32 0.0, %v1144
    %v1146 = vpop.f32.mrf.mxu0
    %1147 = vmatprep.mubr.bf16.mxu0 0
    %1148 = vmatmul.mubr.bf16.gmra.mxu0 %v129
    %v1149 = vpop.f32.mrf.mxu0
    %v1150 = vadd.f32 0.0, %v1149
    %v1151 = vpop.f32.mrf.mxu0
    %v1152 = vpop.f32.mrf.mxu0
    %v1153 = vadd.f32 0.0, %v1152
    %v1154 = vpop.f32.mrf.mxu0
    %1155 = vmatprep.mubr.bf16.mxu0 0
    %1156 = vmatmul.mubr.bf16.gmra.mxu0 %v130
    %v1157 = vpop.f32.mrf.mxu0
    %v1158 = vadd.f32 0.0, %v1157
    %v1159 = vpop.f32.mrf.mxu0
    %v1160 = vpop.f32.mrf.mxu0
    %v1161 = vadd.f32 0.0, %v1160
    %v1162 = vpop.f32.mrf.mxu0
    %1163 = vmatprep.mubr.bf16.mxu0 0
    %1164 = vmatmul.mubr.bf16.gmra.mxu0 %v131
    %v1165 = vpop.f32.mrf.mxu0
    %v1166 = vpop.f32.mrf.mxu0
    %v1167 = vpop.f32.mrf.mxu0
    %v1168 = vpop.f32.mrf.mxu0
    %1169 = vdwg.mxu0
    %v1182 = vrot.slane %v1118, 2
    %v1183 = vrot.slane %v1121, 2
    %v1184 = vsel %vm623, %v1182, %v1183
    %v1185 = vrot.slane %v1126, 2
    %v1186 = vrot.slane %v1129, 2
    %v1187 = vsel %vm623, %v1185, %v1186
    %v1188 = vrot.slane %v1134, 2
    %v1189 = vrot.slane %v1137, 2
    %v1190 = vsel %vm623, %v1188, %v1189
    %v1191 = vrot.slane %v1142, 2
    %v1192 = vrot.slane %v1145, 2
    %v1193 = vsel %vm623, %v1191, %v1192
    %v1194 = vrot.slane %v1150, 2
    %v1195 = vrot.slane %v1153, 2
    %v1196 = vsel %vm623, %v1194, %v1195
    %v1197 = vrot.slane %v1158, 2
    %v1198 = vrot.slane %v1161, 2
    %v1199 = vsel %vm623, %v1197, %v1198
    %v1206 = vadd.f32 %v1006, %v1184
    %v1207 = vadd.f32 %v1007, %v1187
    %v1208 = vadd.f32 %v1008, %v1190
    %v1209 = vadd.f32 %v1009, %v1193
    %v1210 = vadd.f32 %v1010, %v1196
    %v1211 = vadd.f32 %v1011, %v1199
    %s1212 = scalar_lea.vmem [#allocation4], 384
    %v1213 = vld [vmem:[%s1212] sm:$0xf]
    %v1214 = vld [vmem:[%s1212 + $0x4] sm:$0xf]
    %v1215 = vld [vmem:[%s1212 + $0x8] sm:$0xf]
    %v1216 = vld [vmem:[%s1212 + $0xc] sm:$0xf]
    %v1217 = vld [vmem:[%s1212 + $0x10] sm:$0xf]
    %v1218 = vld [vmem:[%s1212 + $0x14] sm:$0xf]
    %v1219 = vld [vmem:[%s1212 + $0x18] sm:$0xf]
    %v1220 = vld [vmem:[%s1212 + $0x1c] sm:$0xf]
    %v1221 = vld [vmem:[%s1212 + $0x20] sm:$0xf]
    %v1222 = vld [vmem:[%s1212 + $0x24] sm:$0xf]
    %v1223 = vld [vmem:[%s1212 + $0x28] sm:$0xf]
    %v1224 = vld [vmem:[%s1212 + $0x2c] sm:$0xf]
    %v1225 = vld [vmem:[%s1212 + $0x30] sm:$0xf]
    %v1226 = vld [vmem:[%s1212 + $0x34] sm:$0xf]
    %v1227 = vld [vmem:[%s1212 + $0x38] sm:$0xf]
    %v1228 = vld [vmem:[%s1212 + $0x3c] sm:$0xf]
    %v1245 = vunpack.c.l.b16 %v1213
    %v1246 = vunpack.c.l.b16 %v1214
    %v1247 = vunpack.c.l.b16 %v1215
    %v1248 = vunpack.c.l.b16 %v1216
    %v1249 = vunpack.c.l.b16 %v1217
    %v1250 = vunpack.c.l.b16 %v1218
    %v1251 = vunpack.c.l.b16 %v1219
    %v1252 = vunpack.c.l.b16 %v1220
    %v1253 = vunpack.c.l.b16 %v1221
    %v1254 = vunpack.c.l.b16 %v1222
    %v1255 = vunpack.c.l.b16 %v1223
    %v1256 = vunpack.c.l.b16 %v1224
    %v1257 = vunpack.c.l.b16 %v1225
    %v1258 = vunpack.c.l.b16 %v1226
    %v1259 = vunpack.c.l.b16 %v1227
    %v1260 = vunpack.c.l.b16 %v1228
    %v1261 = vpack.c.b16 %v1246, %v1245
    %v1262 = vpack.c.b16 %v1248, %v1247
    %v1263 = vpack.c.b16 %v1250, %v1249
    %v1264 = vpack.c.b16 %v1252, %v1251
    %v1265 = vpack.c.b16 %v1254, %v1253
    %v1266 = vpack.c.b16 %v1256, %v1255
    %v1267 = vpack.c.b16 %v1258, %v1257
    %v1268 = vpack.c.b16 %v1260, %v1259
    %1277 = vmatprep.subr.bf16.mxu0 0
    %1278 = vmatpush1.bf16.msra.mxu0 %v1268
    %1279 = vmatprep.subr.bf16.mxu0 0
    %1280 = vmatpush1.bf16.msra.mxu0 %v1267
    %1281 = vmatprep.subr.bf16.mxu0 0
    %1282 = vmatpush1.bf16.msra.mxu0 %v1266
    %1283 = vmatprep.subr.bf16.mxu0 0
    %1284 = vmatpush1.bf16.msra.mxu0 %v1265
    %1285 = vmatprep.subr.bf16.mxu0 0
    %1286 = vmatpush1.bf16.msra.mxu0 %v1264
    %1287 = vmatprep.subr.bf16.mxu0 0
    %1288 = vmatpush1.bf16.msra.mxu0 %v1263
    %1289 = vmatprep.subr.bf16.mxu0 0
    %1290 = vmatpush1.bf16.msra.mxu0 %v1262
    %1291 = vmatprep.subr.bf16.mxu0 0
    %1292 = vmatpush1.bf16.msra.mxu0 %v1261
    %1293 = vmatprep.subr.bf16.mxu0 0
    %1294 = vmatpush2.bf16.msra.mxu0 0
    %1295 = vmatprep.subr.bf16.mxu0 0
    %1296 = vmatpush2.bf16.msra.mxu0 0
    %1297 = vmatprep.subr.bf16.mxu0 0
    %1298 = vmatpush2.bf16.msra.mxu0 0
    %1299 = vmatprep.subr.bf16.mxu0 0
    %1300 = vmatpush2.bf16.msra.mxu0 0
    %1301 = vmatprep.subr.bf16.mxu0 0
    %1302 = vmatpush2.bf16.msra.mxu0 0
    %1303 = vmatprep.subr.bf16.mxu0 0
    %1304 = vmatpush2.bf16.msra.mxu0 0
    %1305 = vmatprep.subr.bf16.mxu0 0
    %1306 = vmatpush2.bf16.msra.mxu0 0
    %1307 = vmatprep.subr.bf16.mxu0 0
    %1308 = vmatpush2.bf16.msra.mxu0 0
    %1309 = vmatprep.mubr.bf16.mxu0 0
    %1310 = vmatmul.mubr.bf16.gmra.mxu0 %v124
    %v1311 = vpop.f32.mrf.mxu0
    %v1312 = vpop.f32.mrf.mxu0
    %v1313 = vpop.f32.mrf.mxu0
    %v1314 = vpop.f32.mrf.mxu0
    %1315 = vmatprep.mubr.bf16.mxu0 0
    %1316 = vmatmul.mubr.bf16.gmra.mxu0 %v125
    %v1317 = vpop.f32.mrf.mxu0
    %v1318 = vpop.f32.mrf.mxu0
    %v1319 = vpop.f32.mrf.mxu0
    %v1320 = vpop.f32.mrf.mxu0
    %1321 = vmatprep.mubr.bf16.mxu0 0
    %1322 = vmatmul.mubr.bf16.gmra.mxu0 %v126
    %v1323 = vpop.f32.mrf.mxu0
    %v1324 = vadd.f32 0.0, %v1323
    %v1325 = vpop.f32.mrf.mxu0
    %v1326 = vpop.f32.mrf.mxu0
    %v1327 = vpop.f32.mrf.mxu0
    %1328 = vmatprep.mubr.bf16.mxu0 0
    %1329 = vmatmul.mubr.bf16.gmra.mxu0 %v127
    %v1330 = vpop.f32.mrf.mxu0
    %v1331 = vadd.f32 0.0, %v1330
    %v1332 = vpop.f32.mrf.mxu0
    %v1333 = vpop.f32.mrf.mxu0
    %v1334 = vpop.f32.mrf.mxu0
    %1335 = vmatprep.mubr.bf16.mxu0 0
    %1336 = vmatmul.mubr.bf16.gmra.mxu0 %v128
    %v1337 = vpop.f32.mrf.mxu0
    %v1338 = vadd.f32 0.0, %v1337
    %v1339 = vpop.f32.mrf.mxu0
    %v1340 = vpop.f32.mrf.mxu0
    %v1341 = vpop.f32.mrf.mxu0
    %1342 = vmatprep.mubr.bf16.mxu0 0
    %1343 = vmatmul.mubr.bf16.gmra.mxu0 %v129
    %v1344 = vpop.f32.mrf.mxu0
    %v1345 = vadd.f32 0.0, %v1344
    %v1346 = vpop.f32.mrf.mxu0
    %v1347 = vpop.f32.mrf.mxu0
    %v1348 = vpop.f32.mrf.mxu0
    %1349 = vmatprep.mubr.bf16.mxu0 0
    %1350 = vmatmul.mubr.bf16.gmra.mxu0 %v130
    %v1351 = vpop.f32.mrf.mxu0
    %v1352 = vadd.f32 0.0, %v1351
    %v1353 = vpop.f32.mrf.mxu0
    %v1354 = vpop.f32.mrf.mxu0
    %v1355 = vpop.f32.mrf.mxu0
    %1356 = vmatprep.mubr.bf16.mxu0 0
    %1357 = vmatmul.mubr.bf16.gmra.mxu0 %v131
    %v1358 = vpop.f32.mrf.mxu0
    %v1359 = vadd.f32 0.0, %v1358
    %v1360 = vpop.f32.mrf.mxu0
    %v1361 = vpop.f32.mrf.mxu0
    %v1362 = vpop.f32.mrf.mxu0
    %1363 = vdwg.mxu0
    %v1364 = vadd.f32 %v1206, %v1324
    %v1365 = vadd.f32 %v1207, %v1331
    %v1366 = vadd.f32 %v1208, %v1338
    %v1367 = vadd.f32 %v1209, %v1345
    %v1368 = vadd.f32 %v1210, %v1352
    %v1369 = vadd.f32 %v1211, %v1359
    %s1370 = scalar_lea.vmem [#allocation4], 448
    %v1371 = vld [vmem:[%s1370] sm:$0xf]
    %v1372 = vld [vmem:[%s1370 + $0x4] sm:$0xf]
    %v1373 = vld [vmem:[%s1370 + $0x8] sm:$0xf]
    %v1374 = vld [vmem:[%s1370 + $0xc] sm:$0xf]
    %v1375 = vld [vmem:[%s1370 + $0x10] sm:$0xf]
    %v1376 = vld [vmem:[%s1370 + $0x14] sm:$0xf]
    %v1377 = vld [vmem:[%s1370 + $0x18] sm:$0xf]
    %v1378 = vld [vmem:[%s1370 + $0x1c] sm:$0xf]
    %v1379 = vld [vmem:[%s1370 + $0x20] sm:$0xf]
    %v1380 = vld [vmem:[%s1370 + $0x24] sm:$0xf]
    %v1381 = vld [vmem:[%s1370 + $0x28] sm:$0xf]
    %v1382 = vld [vmem:[%s1370 + $0x2c] sm:$0xf]
    %v1383 = vld [vmem:[%s1370 + $0x30] sm:$0xf]
    %v1384 = vld [vmem:[%s1370 + $0x34] sm:$0xf]
    %v1385 = vld [vmem:[%s1370 + $0x38] sm:$0xf]
    %v1386 = vld [vmem:[%s1370 + $0x3c] sm:$0xf]
    %v1403 = vunpack.c.l.b16 %v1371
    %v1404 = vunpack.c.l.b16 %v1372
    %v1405 = vunpack.c.l.b16 %v1373
    %v1406 = vunpack.c.l.b16 %v1374
    %v1407 = vunpack.c.l.b16 %v1375
    %v1408 = vunpack.c.l.b16 %v1376
    %v1409 = vunpack.c.l.b16 %v1377
    %v1410 = vunpack.c.l.b16 %v1378
    %v1411 = vunpack.c.l.b16 %v1379
    %v1412 = vunpack.c.l.b16 %v1380
    %v1413 = vunpack.c.l.b16 %v1381
    %v1414 = vunpack.c.l.b16 %v1382
    %v1415 = vunpack.c.l.b16 %v1383
    %v1416 = vunpack.c.l.b16 %v1384
    %v1417 = vunpack.c.l.b16 %v1385
    %v1418 = vunpack.c.l.b16 %v1386
    %v1419 = vpack.c.b16 %v1404, %v1403
    %v1420 = vpack.c.b16 %v1406, %v1405
    %v1421 = vpack.c.b16 %v1408, %v1407
    %v1422 = vpack.c.b16 %v1410, %v1409
    %v1423 = vpack.c.b16 %v1412, %v1411
    %v1424 = vpack.c.b16 %v1414, %v1413
    %v1425 = vpack.c.b16 %v1416, %v1415
    %v1426 = vpack.c.b16 %v1418, %v1417
    %1435 = vmatprep.subr.bf16.mxu0 0
    %1436 = vmatpush1.bf16.msra.mxu0 %v1426
    %1437 = vmatprep.subr.bf16.mxu0 0
    %1438 = vmatpush1.bf16.msra.mxu0 %v1425
    %1439 = vmatprep.subr.bf16.mxu0 0
    %1440 = vmatpush1.bf16.msra.mxu0 %v1424
    %1441 = vmatprep.subr.bf16.mxu0 0
    %1442 = vmatpush1.bf16.msra.mxu0 %v1423
    %1443 = vmatprep.subr.bf16.mxu0 0
    %1444 = vmatpush1.bf16.msra.mxu0 %v1422
    %1445 = vmatprep.subr.bf16.mxu0 0
    %1446 = vmatpush1.bf16.msra.mxu0 %v1421
    %1447 = vmatprep.subr.bf16.mxu0 0
    %1448 = vmatpush1.bf16.msra.mxu0 %v1420
    %1449 = vmatprep.subr.bf16.mxu0 0
    %1450 = vmatpush1.bf16.msra.mxu0 %v1419
    %1451 = vmatprep.subr.bf16.mxu0 0
    %1452 = vmatpush2.bf16.msra.mxu0 0
    %1453 = vmatprep.subr.bf16.mxu0 0
    %1454 = vmatpush2.bf16.msra.mxu0 0
    %1455 = vmatprep.subr.bf16.mxu0 0
    %1456 = vmatpush2.bf16.msra.mxu0 0
    %1457 = vmatprep.subr.bf16.mxu0 0
    %1458 = vmatpush2.bf16.msra.mxu0 0
    %1459 = vmatprep.subr.bf16.mxu0 0
    %1460 = vmatpush2.bf16.msra.mxu0 0
    %1461 = vmatprep.subr.bf16.mxu0 0
    %1462 = vmatpush2.bf16.msra.mxu0 0
    %1463 = vmatprep.subr.bf16.mxu0 0
    %1464 = vmatpush2.bf16.msra.mxu0 0
    %1465 = vmatprep.subr.bf16.mxu0 0
    %1466 = vmatpush2.bf16.msra.mxu0 0
    %1467 = vmatprep.mubr.bf16.mxu0 0
    %1468 = vmatmul.mubr.bf16.gmra.mxu0 %v124
    %v1469 = vpop.f32.mrf.mxu0
    %v1470 = vpop.f32.mrf.mxu0
    %v1471 = vpop.f32.mrf.mxu0
    %v1472 = vpop.f32.mrf.mxu0
    %1473 = vmatprep.mubr.bf16.mxu0 0
    %1474 = vmatmul.mubr.bf16.gmra.mxu0 %v125
    %v1475 = vpop.f32.mrf.mxu0
    %v1476 = vpop.f32.mrf.mxu0
    %v1477 = vpop.f32.mrf.mxu0
    %v1478 = vpop.f32.mrf.mxu0
    %1479 = vmatprep.mubr.bf16.mxu0 0
    %1480 = vmatmul.mubr.bf16.gmra.mxu0 %v126
    %v1481 = vpop.f32.mrf.mxu0
    %v1482 = vadd.f32 0.0, %v1481
    %v1483 = vpop.f32.mrf.mxu0
    %v1484 = vpop.f32.mrf.mxu0
    %v1485 = vadd.f32 0.0, %v1484
    %v1486 = vpop.f32.mrf.mxu0
    %1487 = vmatprep.mubr.bf16.mxu0 0
    %1488 = vmatmul.mubr.bf16.gmra.mxu0 %v127
    %v1489 = vpop.f32.mrf.mxu0
    %v1490 = vadd.f32 0.0, %v1489
    %v1491 = vpop.f32.mrf.mxu0
    %v1492 = vpop.f32.mrf.mxu0
    %v1493 = vadd.f32 0.0, %v1492
    %v1494 = vpop.f32.mrf.mxu0
    %1495 = vmatprep.mubr.bf16.mxu0 0
    %1496 = vmatmul.mubr.bf16.gmra.mxu0 %v128
    %v1497 = vpop.f32.mrf.mxu0
    %v1498 = vadd.f32 0.0, %v1497
    %v1499 = vpop.f32.mrf.mxu0
    %v1500 = vpop.f32.mrf.mxu0
    %v1501 = vadd.f32 0.0, %v1500
    %v1502 = vpop.f32.mrf.mxu0
    %1503 = vmatprep.mubr.bf16.mxu0 0
    %1504 = vmatmul.mubr.bf16.gmra.mxu0 %v129
    %v1505 = vpop.f32.mrf.mxu0
    %v1506 = vadd.f32 0.0, %v1505
    %v1507 = vpop.f32.mrf.mxu0
    %v1508 = vpop.f32.mrf.mxu0
    %v1509 = vadd.f32 0.0, %v1508
    %v1510 = vpop.f32.mrf.mxu0
    %1511 = vmatprep.mubr.bf16.mxu0 0
    %1512 = vmatmul.mubr.bf16.gmra.mxu0 %v130
    %v1513 = vpop.f32.mrf.mxu0
    %v1514 = vadd.f32 0.0, %v1513
    %v1515 = vpop.f32.mrf.mxu0
    %v1516 = vpop.f32.mrf.mxu0
    %v1517 = vadd.f32 0.0, %v1516
    %v1518 = vpop.f32.mrf.mxu0
    %1519 = vmatprep.mubr.bf16.mxu0 0
    %1520 = vmatmul.mubr.bf16.gmra.mxu0 %v131
    %v1521 = vpop.f32.mrf.mxu0
    %v1522 = vadd.f32 0.0, %v1521
    %v1523 = vpop.f32.mrf.mxu0
    %v1524 = vpop.f32.mrf.mxu0
    %v1525 = vadd.f32 0.0, %v1524
    %v1526 = vpop.f32.mrf.mxu0
    %1527 = vdwg.mxu0
    %v1540 = vrot.slane %v1482, 1
    %v1541 = vrot.slane %v1485, 1
    %v1542 = vsel %vm293, %v1540, %v1541
    %v1543 = vrot.slane %v1490, 1
    %v1544 = vrot.slane %v1493, 1
    %v1545 = vsel %vm293, %v1543, %v1544
    %v1546 = vrot.slane %v1498, 1
    %v1547 = vrot.slane %v1501, 1
    %v1548 = vsel %vm293, %v1546, %v1547
    %v1549 = vrot.slane %v1506, 1
    %v1550 = vrot.slane %v1509, 1
    %v1551 = vsel %vm293, %v1549, %v1550
    %v1552 = vrot.slane %v1514, 1
    %v1553 = vrot.slane %v1517, 1
    %v1554 = vsel %vm293, %v1552, %v1553
    %v1555 = vrot.slane %v1522, 1
    %v1556 = vrot.slane %v1525, 1
    %v1557 = vsel %vm293, %v1555, %v1556
    %v1564 = vadd.f32 %v1364, %v1542
    %v1565 = vadd.f32 %v1365, %v1545
    %v1566 = vadd.f32 %v1366, %v1548
    %v1567 = vadd.f32 %v1367, %v1551
    %v1568 = vadd.f32 %v1368, %v1554
    %v1569 = vadd.f32 %v1369, %v1557
    %s1570 = scalar_lea.vmem [#allocation4], 512
    %v1571 = vld [vmem:[%s1570] sm:$0xf]
    %v1572 = vld [vmem:[%s1570 + $0x4] sm:$0xf]
    %v1573 = vld [vmem:[%s1570 + $0x8] sm:$0xf]
    %v1574 = vld [vmem:[%s1570 + $0xc] sm:$0xf]
    %v1575 = vld [vmem:[%s1570 + $0x10] sm:$0xf]
    %v1576 = vld [vmem:[%s1570 + $0x14] sm:$0xf]
    %v1577 = vld [vmem:[%s1570 + $0x18] sm:$0xf]
    %v1578 = vld [vmem:[%s1570 + $0x1c] sm:$0xf]
    %v1579 = vld [vmem:[%s1570 + $0x20] sm:$0xf]
    %v1580 = vld [vmem:[%s1570 + $0x24] sm:$0xf]
    %v1581 = vld [vmem:[%s1570 + $0x28] sm:$0xf]
    %v1582 = vld [vmem:[%s1570 + $0x2c] sm:$0xf]
    %v1583 = vld [vmem:[%s1570 + $0x30] sm:$0xf]
    %v1584 = vld [vmem:[%s1570 + $0x34] sm:$0xf]
    %v1585 = vld [vmem:[%s1570 + $0x38] sm:$0xf]
    %v1586 = vld [vmem:[%s1570 + $0x3c] sm:$0xf]
    %v1603 = vunpack.c.l.b16 %v1571
    %v1604 = vunpack.c.l.b16 %v1572
    %v1605 = vunpack.c.l.b16 %v1573
    %v1606 = vunpack.c.l.b16 %v1574
    %v1607 = vunpack.c.l.b16 %v1575
    %v1608 = vunpack.c.l.b16 %v1576
    %v1609 = vunpack.c.l.b16 %v1577
    %v1610 = vunpack.c.l.b16 %v1578
    %v1611 = vunpack.c.l.b16 %v1579
    %v1612 = vunpack.c.l.b16 %v1580
    %v1613 = vunpack.c.l.b16 %v1581
    %v1614 = vunpack.c.l.b16 %v1582
    %v1615 = vunpack.c.l.b16 %v1583
    %v1616 = vunpack.c.l.b16 %v1584
    %v1617 = vunpack.c.l.b16 %v1585
    %v1618 = vunpack.c.l.b16 %v1586
    %v1619 = vpack.c.b16 %v1604, %v1603
    %v1620 = vpack.c.b16 %v1606, %v1605
    %v1621 = vpack.c.b16 %v1608, %v1607
    %v1622 = vpack.c.b16 %v1610, %v1609
    %v1623 = vpack.c.b16 %v1612, %v1611
    %v1624 = vpack.c.b16 %v1614, %v1613
    %v1625 = vpack.c.b16 %v1616, %v1615
    %v1626 = vpack.c.b16 %v1618, %v1617
    %1635 = vmatprep.subr.bf16.mxu0 0
    %1636 = vmatpush1.bf16.msra.mxu0 %v1626
    %1637 = vmatprep.subr.bf16.mxu0 0
    %1638 = vmatpush1.bf16.msra.mxu0 %v1625
    %1639 = vmatprep.subr.bf16.mxu0 0
    %1640 = vmatpush1.bf16.msra.mxu0 %v1624
    %1641 = vmatprep.subr.bf16.mxu0 0
    %1642 = vmatpush1.bf16.msra.mxu0 %v1623
    %1643 = vmatprep.subr.bf16.mxu0 0
    %1644 = vmatpush1.bf16.msra.mxu0 %v1622
    %1645 = vmatprep.subr.bf16.mxu0 0
    %1646 = vmatpush1.bf16.msra.mxu0 %v1621
    %1647 = vmatprep.subr.bf16.mxu0 0
    %1648 = vmatpush1.bf16.msra.mxu0 %v1620
    %1649 = vmatprep.subr.bf16.mxu0 0
    %1650 = vmatpush1.bf16.msra.mxu0 %v1619
    %1651 = vmatprep.subr.bf16.mxu0 0
    %1652 = vmatpush2.bf16.msra.mxu0 0
    %1653 = vmatprep.subr.bf16.mxu0 0
    %1654 = vmatpush2.bf16.msra.mxu0 0
    %1655 = vmatprep.subr.bf16.mxu0 0
    %1656 = vmatpush2.bf16.msra.mxu0 0
    %1657 = vmatprep.subr.bf16.mxu0 0
    %1658 = vmatpush2.bf16.msra.mxu0 0
    %1659 = vmatprep.subr.bf16.mxu0 0
    %1660 = vmatpush2.bf16.msra.mxu0 0
    %1661 = vmatprep.subr.bf16.mxu0 0
    %1662 = vmatpush2.bf16.msra.mxu0 0
    %1663 = vmatprep.subr.bf16.mxu0 0
    %1664 = vmatpush2.bf16.msra.mxu0 0
    %1665 = vmatprep.subr.bf16.mxu0 0
    %1666 = vmatpush2.bf16.msra.mxu0 0
    %1667 = vmatprep.mubr.bf16.mxu0 0
    %1668 = vmatmul.mubr.bf16.gmra.mxu0 %v124
    %v1669 = vpop.f32.mrf.mxu0
    %v1670 = vpop.f32.mrf.mxu0
    %v1671 = vpop.f32.mrf.mxu0
    %v1672 = vpop.f32.mrf.mxu0
    %1673 = vmatprep.mubr.bf16.mxu0 0
    %1674 = vmatmul.mubr.bf16.gmra.mxu0 %v125
    %v1675 = vpop.f32.mrf.mxu0
    %v1676 = vpop.f32.mrf.mxu0
    %v1677 = vpop.f32.mrf.mxu0
    %v1678 = vpop.f32.mrf.mxu0
    %1679 = vmatprep.mubr.bf16.mxu0 0
    %1680 = vmatmul.mubr.bf16.gmra.mxu0 %v126
    %v1681 = vpop.f32.mrf.mxu0
    %v1682 = vadd.f32 0.0, %v1681
    %v1683 = vpop.f32.mrf.mxu0
    %v1684 = vpop.f32.mrf.mxu0
    %v1685 = vadd.f32 0.0, %v1684
    %v1686 = vpop.f32.mrf.mxu0
    %1687 = vmatprep.mubr.bf16.mxu0 0
    %1688 = vmatmul.mubr.bf16.gmra.mxu0 %v127
    %v1689 = vpop.f32.mrf.mxu0
    %v1690 = vadd.f32 0.0, %v1689
    %v1691 = vpop.f32.mrf.mxu0
    %v1692 = vpop.f32.mrf.mxu0
    %v1693 = vadd.f32 0.0, %v1692
    %v1694 = vpop.f32.mrf.mxu0
    %1695 = vmatprep.mubr.bf16.mxu0 0
    %1696 = vmatmul.mubr.bf16.gmra.mxu0 %v128
    %v1697 = vpop.f32.mrf.mxu0
    %v1698 = vadd.f32 0.0, %v1697
    %v1699 = vpop.f32.mrf.mxu0
    %v1700 = vpop.f32.mrf.mxu0
    %v1701 = vadd.f32 0.0, %v1700
    %v1702 = vpop.f32.mrf.mxu0
    %1703 = vmatprep.mubr.bf16.mxu0 0
    %1704 = vmatmul.mubr.bf16.gmra.mxu0 %v129
    %v1705 = vpop.f32.mrf.mxu0
    %v1706 = vadd.f32 0.0, %v1705
    %v1707 = vpop.f32.mrf.mxu0
    %v1708 = vpop.f32.mrf.mxu0
    %v1709 = vadd.f32 0.0, %v1708
    %v1710 = vpop.f32.mrf.mxu0
    %1711 = vmatprep.mubr.bf16.mxu0 0
    %1712 = vmatmul.mubr.bf16.gmra.mxu0 %v130
    %v1713 = vpop.f32.mrf.mxu0
    %v1714 = vadd.f32 0.0, %v1713
    %v1715 = vpop.f32.mrf.mxu0
    %v1716 = vpop.f32.mrf.mxu0
    %v1717 = vadd.f32 0.0, %v1716
    %v1718 = vpop.f32.mrf.mxu0
    %1719 = vmatprep.mubr.bf16.mxu0 0
    %1720 = vmatmul.mubr.bf16.gmra.mxu0 %v131
    %v1721 = vpop.f32.mrf.mxu0
    %v1722 = vadd.f32 0.0, %v1721
    %v1723 = vpop.f32.mrf.mxu0
    %v1724 = vpop.f32.mrf.mxu0
    %v1725 = vadd.f32 0.0, %v1724
    %v1726 = vpop.f32.mrf.mxu0
    %1727 = vdwg.mxu0
    %v1740 = vrot.slane %v1682, 2
    %v1741 = vrot.slane %v1685, 2
    %v1742 = vsel %vm623, %v1740, %v1741
    %v1743 = vrot.slane %v1690, 2
    %v1744 = vrot.slane %v1693, 2
    %v1745 = vsel %vm623, %v1743, %v1744
    %v1746 = vrot.slane %v1698, 2
    %v1747 = vrot.slane %v1701, 2
    %v1748 = vsel %vm623, %v1746, %v1747
    %v1749 = vrot.slane %v1706, 2
    %v1750 = vrot.slane %v1709, 2
    %v1751 = vsel %vm623, %v1749, %v1750
    %v1752 = vrot.slane %v1714, 2
    %v1753 = vrot.slane %v1717, 2
    %v1754 = vsel %vm623, %v1752, %v1753
    %v1755 = vrot.slane %v1722, 2
    %v1756 = vrot.slane %v1725, 2
    %v1757 = vsel %vm623, %v1755, %v1756
    %v1764 = vadd.f32 %v1564, %v1742
    %v1765 = vadd.f32 %v1565, %v1745
    %v1766 = vadd.f32 %v1566, %v1748
    %v1767 = vadd.f32 %v1567, %v1751
    %v1768 = vadd.f32 %v1568, %v1754
    %v1769 = vadd.f32 %v1569, %v1757
    %v1770 = vld [vmem:[%s2] sm:$0x1]
    %v1772 = vlaneseq
    %v1773 = vshrl.u32 %v1772, 7
    %v1774 = vsub.s32 0, %v1773
    %v1775 = vrot.slane %v1770, %v1774
    %v1777 = vadd.f32 %v1764, %v1775
    %v1778 = vadd.f32 %v1765, %v1775
    %v1779 = vadd.f32 %v1766, %v1775
    %v1780 = vadd.f32 %v1767, %v1775
    %v1781 = vadd.f32 %v1768, %v1775
    %v1782 = vadd.f32 %v1769, %v1775
    %v1783 = vsel %vm293, %v1777, 0.0
    %v1784 = vsel %vm293, %v1778, 0.0
    %v1785 = vadd.f32 %v1783, %v1784
    %v1786 = vsel %vm293, %v1779, 0.0
    %v1787 = vadd.f32 %v1785, %v1786
    %v1788 = vsel %vm293, %v1780, 0.0
    %v1789 = vadd.f32 %v1787, %v1788
    %v1790 = vsel %vm293, %v1781, 0.0
    %v1791 = vadd.f32 %v1789, %v1790
    %v1792 = vsel %vm293, %v1782, 0.0
    %v1793 = vadd.f32 %v1791, %v1792
    %v1794 = vrot.slane %v1793, 4
    %v1795 = vadd.f32 %v1793, %v1794
    %v1796 = vrot.slane %v1795, 2
    %v1797 = vadd.f32 %v1795, %v1796
    %v1798 = vrot.slane %v1797, 1
    %v1799 = vadd.f32 %v1797, %v1798
    %v1800 = vmul.f32 %v1799, 0.023809524
    %v1801 = vsub.f32 %v1777, %v1800
    %v1802 = vsub.f32 %v1778, %v1800
    %v1803 = vsub.f32 %v1779, %v1800
    %v1804 = vsub.f32 %v1780, %v1800
    %v1805 = vsub.f32 %v1781, %v1800
    %v1806 = vsub.f32 %v1782, %v1800
    %v1807 = vmul.f32 %v1801, %v1801
    %v1808 = vmul.f32 %v1802, %v1802
    %v1809 = vmul.f32 %v1803, %v1803
    %v1810 = vmul.f32 %v1804, %v1804
    %v1811 = vmul.f32 %v1805, %v1805
    %v1812 = vmul.f32 %v1806, %v1806
    %v1813 = vsel %vm293, %v1807, 0.0
    %v1814 = vsel %vm293, %v1808, 0.0
    %v1815 = vadd.f32 %v1813, %v1814
    %v1816 = vsel %vm293, %v1809, 0.0
    %v1817 = vadd.f32 %v1815, %v1816
    %v1818 = vsel %vm293, %v1810, 0.0
    %v1819 = vadd.f32 %v1817, %v1818
    %v1820 = vsel %vm293, %v1811, 0.0
    %v1821 = vadd.f32 %v1819, %v1820
    %v1822 = vsel %vm293, %v1812, 0.0
    %v1823 = vadd.f32 %v1821, %v1822
    %v1824 = vrot.slane %v1823, 4
    %v1825 = vadd.f32 %v1823, %v1824
    %v1826 = vrot.slane %v1825, 2
    %v1827 = vadd.f32 %v1825, %v1826
    %v1828 = vrot.slane %v1827, 1
    %v1829 = vadd.f32 %v1827, %v1828
    %v1830 = vmul.f32 %v1829, 0.023809524
    %v1831 = vadd.f32 %v1830, 1e-05
    %v1832 = vrsqrt.pop %v1831
    %v1833 = vmul.f32 %v1801, %v1832
    %v1834 = vmul.f32 %v1802, %v1832
    %v1835 = vmul.f32 %v1803, %v1832
    %v1836 = vmul.f32 %v1804, %v1832
    %v1837 = vmul.f32 %v1805, %v1832
    %v1838 = vmul.f32 %v1806, %v1832
    %v1839 = vmax.f32 %v1833, 0.0
    %v1840 = vmax.f32 %v1834, 0.0
    %v1841 = vmax.f32 %v1835, 0.0
    %v1842 = vmax.f32 %v1836, 0.0
    %v1843 = vmax.f32 %v1837, 0.0
    %v1844 = vmax.f32 %v1838, 0.0
    %1845 = vst [vmem:[%s3] sm:$0x7f] %v1839
    %1846 = vst [vmem:[%s3 + $0x8] sm:$0x7f] %v1840
    %1847 = vst [vmem:[%s3 + $0x10] sm:$0x7f] %v1841
    %1848 = vst [vmem:[%s3 + $0x18] sm:$0x7f] %v1842
    %1849 = vst [vmem:[%s3 + $0x20] sm:$0x7f] %v1843
    %1850 = vst [vmem:[%s3 + $0x28] sm:$0x7f] %v1844
    // Predicated region
    $region22: #{tpu_custom_call.1} parent=1 // pred_check
      _
    $region23: #{tpu_custom_call.1} parent=1 // pred_check_branch
      %1852 = sbr.rel (0) target = $region25
    $region24: #{tpu_custom_call.1} parent=1 // pred_region
      _
    $region25: #{tpu_custom_call.1} parent=1 // pred_fallthru
      _
    // Predicated region
    $region26: #{tpu_custom_call.1} parent=1 // pred_check
      _
    $region27: #{tpu_custom_call.1} parent=1 // pred_check_branch
      %1854 = sbr.rel (0) target = $region29
    $region28: #{tpu_custom_call.1} parent=1 // pred_region
      _
    $region29: #{tpu_custom_call.1} parent=1 // pred_fallthru
      _
    %1855 = vsyncpa [#allocation3], 1
    %1856 = vsyncpa [#allocation5], 1

</llo_original>
